<compile_context>
chip_gen: v7x
topology: tpu7x:2x2x1
jax: 0.10.0
libtpu: 0.0.40
codegen_flags: <defaults>
</compile_context>

<pallas_src>
import functools

import jax
import jax.numpy as jnp
from jax.experimental import pallas as pl
from jax.experimental.pallas import tpu as pltpu

LANES = 128                     # Cout_g padded to this many lanes for MXU/acc
MAX_TM = 2048                   # max rows per conv tile
MAX_SINGLE_K = 4096             # collapse the K grid axis when Kp <= this
TK_FALLBACK = 512               # K tile for the (rare) huge-K fallback
A_TILE_BUDGET = 8 * 1024 * 1024     # double-buffered A tile byte budget
BN_TILE_BUDGET = 8 * 1024 * 1024    # double-buffered BN tile byte budget
VMEM_LIMIT = 32 * 1024 * 1024       # scoped VMEM request (safe on v5e/v6e/v7x)


def _round_up(x, m):
    return (x + m - 1) // m * m


def _pick_tm(m_n, k_extent):
    """Rows per conv tile: as large as the A double-buffer budget allows."""
    tm = MAX_TM
    while tm > 128 and 2 * tm * k_extent * 2 > A_TILE_BUDGET:
        tm //= 2
    return max(128, min(tm, _round_up(m_n, 256)))


def _pick_tm2(mp, tm, cout_g):
    """Rows per BN+ReLU tile: a multiple of tm dividing Mp, budget-capped."""
    mt = mp // tm
    cap = max(1, BN_TILE_BUDGET // (12 * max(cout_g, 1) * tm))
    best = 1
    for k in range(1, min(mt, cap) + 1):
        if mt % k == 0:
            best = k
    return tm * best


# ---------------------------------------------------------------------------
# Kernel 1: conv-as-matmul (bf16 in, f32 accumulate) + fused BN partial stats.
#   A: (G, N, Mp, Kp) bf16           block (TM, Kp)   [or (TM, TK) fallback]
#   B: (G, Kp, CoutP) bf16           block (Kp, CoutP) resident per group
#   O: (G, N, Cout_g, Mp) bf16       block (Cout_g, TM)  (channels-major!)
#   S/Q: (G, N, mt*8, CoutP) f32     per-tile column sums / sums-of-squares
#                                    broadcast across the 8 sublanes of a block
# ---------------------------------------------------------------------------
def _conv_epilogue(acc, cout_g, o_ref, s_ref, q_ref):
    # Per-channel partial sums / sums of squares for the fused BN statistics.
    # NOTE: variance is finished as E[x^2]-E[x]^2 in the wrapper; f32
    # cancellation is clamped there (fine for conv outputs, see comment).
    s_ref[...] = jnp.broadcast_to(jnp.sum(acc, axis=0, keepdims=True), s_ref.shape)
    q_ref[...] = jnp.broadcast_to(jnp.sum(acc * acc, axis=0, keepdims=True), q_ref.shape)
    # Transpose to channels-major (XLU) and drop the padded lanes: the conv
    # intermediate is stored (Cout_g, TM) bf16 -> lane-dense, real channels
    # only, and already in the NC(DHW) order the module must return.
    acc_t = jnp.transpose(acc, (1, 0))          # (CoutP, TM) f32
    o_ref[...] = acc_t[:cout_g, :].astype(o_ref.dtype)


def _conv_single_k_kernel(a_ref, b_ref, o_ref, s_ref, q_ref, *, cout_g):
    acc = jnp.dot(a_ref[...], b_ref[...], preferred_element_type=jnp.float32)
    _conv_epilogue(acc, cout_g, o_ref, s_ref, q_ref)


def _conv_tiled_k_kernel(a_ref, b_ref, o_ref, s_ref, q_ref, acc_ref, *, cout_g):
    k = pl.program_id(3)

    @pl.when(k == 0)
    def _():
        acc_ref[...] = jnp.zeros_like(acc_ref)

    acc_ref[...] += jnp.dot(a_ref[...], b_ref[...],
                            preferred_element_type=jnp.float32)

    @pl.when(k == pl.num_programs(3) - 1)
    def _():
        _conv_epilogue(acc_ref[...], cout_g, o_ref, s_ref, q_ref)


def _conv_bn_stats(cols, w_mat, cout_g, tm, tk):
    G, N, Mp, Kp = cols.shape
    coutp = w_mat.shape[-1]
    mt = Mp // tm
    out_shape = (
        jax.ShapeDtypeStruct((G, N, cout_g, Mp), jnp.bfloat16),
        jax.ShapeDtypeStruct((G, N, mt * 8, coutp), jnp.float32),
        jax.ShapeDtypeStruct((G, N, mt * 8, coutp), jnp.float32),
    )
    if tk is None:
        # Collapsed-K path: one dot per row tile, no accumulator scratch.
        grid = (G, N, mt)
        in_specs = [
            pl.BlockSpec((None, None, tm, Kp), lambda g, n, i: (g, n, i, 0)),
            pl.BlockSpec((None, Kp, coutp), lambda g, n, i: (g, 0, 0)),
        ]
        out_specs = (
            pl.BlockSpec((None, None, cout_g, tm), lambda g, n, i: (g, n, 0, i)),
            pl.BlockSpec((None, None, 8, coutp), lambda g, n, i: (g, n, i, 0)),
            pl.BlockSpec((None, None, 8, coutp), lambda g, n, i: (g, n, i, 0)),
        )
        scratch = []
        kernel = functools.partial(_conv_single_k_kernel, cout_g=cout_g)
        sem = ("arbitrary", "parallel", "parallel")
    else:
        # Huge-K fallback: classic K-tiled accumulation (not hit by X3D shapes).
        kt = Kp // tk
        grid = (G, N, mt, kt)
        in_specs = [
            pl.BlockSpec((None, None, tm, tk), lambda g, n, i, k: (g, n, i, k)),
            pl.BlockSpec((None, tk, coutp), lambda g, n, i, k: (g, k, 0)),
        ]
        out_specs = (
            pl.BlockSpec((None, None, cout_g, tm), lambda g, n, i, k: (g, n, 0, i)),
            pl.BlockSpec((None, None, 8, coutp), lambda g, n, i, k: (g, n, i, 0)),
            pl.BlockSpec((None, None, 8, coutp), lambda g, n, i, k: (g, n, i, 0)),
        )
        scratch = [pltpu.VMEM((tm, coutp), jnp.float32)]
        kernel = functools.partial(_conv_tiled_k_kernel, cout_g=cout_g)
        sem = ("arbitrary", "parallel", "parallel", "arbitrary")

    return pl.pallas_call(
        kernel,
        out_shape=out_shape,
        grid_spec=pltpu.PrefetchScalarGridSpec(
            num_scalar_prefetch=0,
            grid=grid,
            in_specs=in_specs,
            out_specs=out_specs,
            scratch_shapes=scratch),
        compiler_params=pltpu.CompilerParams(
            dimension_semantics=sem, vmem_limit_bytes=VMEM_LIMIT),
    )(cols, w_mat)


# ---------------------------------------------------------------------------
# Kernel 2: fused BatchNorm normalize + affine + ReLU on the channels-major
# bf16 intermediate; writes f32 into (N, G, Cout_g, Mp) -> NCDHW by reshape.
# ---------------------------------------------------------------------------
def _bn_relu_kernel(p_ref, scale_ref, shift_ref, o_ref):
    x = p_ref[...].astype(jnp.float32)                     # (Cout_g, TM2)
    o_ref[...] = jnp.maximum(x * scale_ref[...] + shift_ref[...], 0.0)


def _bn_relu(conv_p, scale, shift, tm2):
    G, N, cout_g, Mp = conv_p.shape
    jt = Mp // tm2
    return pl.pallas_call(
        _bn_relu_kernel,
        out_shape=jax.ShapeDtypeStruct((N, G, cout_g, Mp), jnp.float32),
        grid_spec=pltpu.PrefetchScalarGridSpec(
            num_scalar_prefetch=0,
            grid=(G, N, jt),
            in_specs=[
                pl.BlockSpec((None, None, cout_g, tm2),
                             lambda g, n, j: (g, n, 0, j)),
                pl.BlockSpec((None, cout_g, 1), lambda g, n, j: (g, 0, 0)),
                pl.BlockSpec((None, cout_g, 1), lambda g, n, j: (g, 0, 0)),
            ],
            out_specs=pl.BlockSpec((None, None, cout_g, tm2),
                                   lambda g, n, j: (n, g, 0, j)),
        ),
        compiler_params=pltpu.CompilerParams(
            dimension_semantics=("arbitrary", "parallel", "parallel"),
            vmem_limit_bytes=VMEM_LIMIT),
    )(conv_p, scale, shift)


# ---------------------------------------------------------------------------
# JAX glue: channels-last im2col per group, padding, BN finish, reshape back.
# ---------------------------------------------------------------------------
def _im2col(x_ndhwc, kernel, stride, padding):
    N, T, H, W, Cin = x_ndhwc.shape
    kT, kH, kW = kernel
    sT, sH, sW = stride
    pT, pH, pW = padding
    xp = jnp.pad(x_ndhwc, ((0, 0), (pT, pT), (pH, pH), (pW, pW), (0, 0)))
    To = (T + 2 * pT - kT) // sT + 1
    Ho = (H + 2 * pH - kH) // sH + 1
    Wo = (W + 2 * pW - kW) // sW + 1
    patches = []
    for kt in range(kT):
        for kh in range(kH):
            for kw in range(kW):
                patches.append(
                    xp[:, kt:kt + (To - 1) * sT + 1:sT,
                          kh:kh + (Ho - 1) * sH + 1:sH,
                          kw:kw + (Wo - 1) * sW + 1:sW, :])
    cols = jnp.stack(patches, axis=4)             # (N,To,Ho,Wo, taps, Cin)
    cols = cols.reshape(N, To * Ho * Wo, kT * kH * kW * Cin)
    return cols, (To, Ho, Wo)


def x3d_basic_conv_forward(x_list, w, gamma, beta, *, kernel, stride, padding,
                           groups=1, eps=1e-5):
    """Mirrors X3DBasiConv.forward: x = x[0]; conv; bn (batch stats); relu."""
    x = x_list[0]                                 # (N, Cin, T, H, W)
    N, Cin, T, H, W = x.shape
    Cout = w.shape[0]
    G = groups
    Cin_g = Cin // G
    Cout_g = Cout // G
    coutp = _round_up(Cout_g, LANES)

    # bf16 inputs (f32 MXU accumulation in the kernel); casting before im2col
    # halves the HBM footprint of the im2col intermediate too.
    x_cl = jnp.transpose(x, (0, 2, 3, 4, 1)).astype(jnp.bfloat16)   # NDHWC

    cols_list, w_list = [], []
    To = Ho = Wo = None
    for g in range(G):
        xg = x_cl[..., g * Cin_g:(g + 1) * Cin_g]
        cols_g, (To, Ho, Wo) = _im2col(xg, kernel, stride, padding)  # (N,M_n,K)
        cols_list.append(cols_g)
        wg = w[g * Cout_g:(g + 1) * Cout_g]        # (Cout_g, Cin_g, kT, kH, kW)
        w_list.append(jnp.transpose(wg, (2, 3, 4, 1, 0)).reshape(-1, Cout_g))

    M_n = To * Ho * Wo
    K = cols_list[0].shape[-1]

    single_k = _round_up(K, LANES) <= MAX_SINGLE_K
    if single_k:
        Kp = _round_up(K, LANES)
        tk = None
        tm = _pick_tm(M_n, Kp)
    else:
        tk = TK_FALLBACK
        Kp = _round_up(K, tk)
        tm = _pick_tm(M_n, tk)
    Mp = _round_up(M_n, tm)

    cols = jnp.stack(cols_list, axis=0)                      # (G, N, M_n, K)
    cols = jnp.pad(cols, ((0, 0), (0, 0), (0, Mp - M_n), (0, Kp - K)))
    w_mat = jnp.stack(w_list, axis=0).astype(jnp.bfloat16)   # (G, K, Cout_g)
    w_mat = jnp.pad(w_mat, ((0, 0), (0, Kp - K), (0, coutp - Cout_g)))

    conv_p, s_arr, q_arr = _conv_bn_stats(cols, w_mat, Cout_g, tm, tk)

    # Finish BN statistics + per-channel scale/shift (tiny arrays).
    # Zero-padded rows / K columns / lanes contribute exactly 0 (no conv bias).
    count = N * M_n
    sums = s_arr[:, :, ::8, :Cout_g].sum(axis=(1, 2))        # (G, Cout_g)
    sqs = q_arr[:, :, ::8, :Cout_g].sum(axis=(1, 2))
    mean = sums / count
    # E[x^2]-E[x]^2 can cancel in f32 when |mean| >> std; clamp (conv outputs
    # of a bias-free conv are near zero-mean, so this is benign here).
    var = jnp.maximum(sqs / count - mean * mean, 0.0)
    inv = jax.lax.rsqrt(var + eps)
    g2 = gamma.astype(jnp.float32).reshape(G, Cout_g)
    b2 = beta.astype(jnp.float32).reshape(G, Cout_g)
    scale = (g2 * inv)[..., None]                            # (G, Cout_g, 1)
    shift = (b2 - mean * g2 * inv)[..., None]

    tm2 = _pick_tm2(Mp, tm, Cout_g)
    out_p = _bn_relu(conv_p, scale, shift, tm2)              # (N, G, Cout_g, Mp)

    y = out_p[..., :M_n] if Mp != M_n else out_p
    y = y.reshape(N, Cout, To, Ho, Wo)                       # pure reshape
    return [y]


if __name__ == "__main__":
    configs = [
        # (stem-like) N, dim_in, dim_out, T, H, W, kernel, stride, padding, groups
        dict(N=2, dim_in=3, dim_out=8, T=8, H=16, W=16,
             kernel=(3, 3, 3), stride=(1, 2, 2), padding=(1, 1, 1), groups=1),
        # grouped variant; also exercises M-row padding + final slice path
        dict(N=2, dim_in=4, dim_out=16, T=4, H=8, W=8,
             kernel=(3, 3, 3), stride=(1, 2, 2), padding=(1, 1, 1), groups=2),
    ]
    eps = 1e-5
    key = jax.random.PRNGKey(0)

    for cfg in configs:
        N, dim_in, dim_out = cfg["N"], cfg["dim_in"], cfg["dim_out"]
        T, H, W = cfg["T"], cfg["H"], cfg["W"]
        kernel, stride, padding = cfg["kernel"], cfg["stride"], cfg["padding"]
        groups = cfg["groups"]

        key, k1, k2, k3, k4 = jax.random.split(key, 5)
        x = jax.random.normal(k1, (N, dim_in, T, H, W), dtype=jnp.float32)
        fan_in = (dim_in // groups) * kernel[0] * kernel[1] * kernel[2]
        bound = 1.0 / (fan_in ** 0.5)
        w = jax.random.uniform(k2, (dim_out, dim_in // groups, *kernel),
                               dtype=jnp.float32, minval=-bound, maxval=bound)
        gamma = 1.0 + 0.1 * jax.random.normal(k3, (dim_out,), dtype=jnp.float32)
        beta = 0.1 * jax.random.normal(k4, (dim_out,), dtype=jnp.float32)

        fwd = jax.jit(functools.partial(
            x3d_basic_conv_forward, kernel=kernel, stride=stride,
            padding=padding, groups=groups, eps=eps))
        out = fwd([x], w, gamma, beta)
        y = jax.block_until_ready(out[0])

        # Pure-JAX references (BatchNorm in training mode, biased variance).
        def bn_relu_ref(conv):
            mean = conv.mean(axis=(0, 2, 3, 4))
            var = conv.var(axis=(0, 2, 3, 4))
            inv = 1.0 / jnp.sqrt(var + eps)
            sc = (gamma * inv)[None, :, None, None, None]
            sh = (beta - mean * gamma * inv)[None, :, None, None, None]
            return jnp.maximum(conv * sc + sh, 0.0)

        conv_f32 = jax.lax.conv_general_dilated(
            x, w, window_strides=stride, padding=[(p, p) for p in padding],
            dimension_numbers=("NCDHW", "OIDHW", "NCDHW"),
            feature_group_count=groups, precision=jax.lax.Precision.HIGHEST)
        ref_f32 = bn_relu_ref(conv_f32)

        conv_bf16 = jax.lax.conv_general_dilated(
            x.astype(jnp.bfloat16), w.astype(jnp.bfloat16),
            window_strides=stride, padding=[(p, p) for p in padding],
            dimension_numbers=("NCDHW", "OIDHW", "NCDHW"),
            feature_group_count=groups, preferred_element_type=jnp.float32)
        ref_bf16 = bn_relu_ref(conv_bf16)

        assert y.shape == ref_f32.shape, (y.shape, ref_f32.shape)
        # Tight check against a reference sharing the kernel's input numerics
        # (bf16 inputs, f32 accumulation); the kernel additionally stores the
        # conv intermediate in bf16, hence the 1e-2 tolerance. Looser check
        # against the exact f32 module semantics.
        err_bf16 = float(jnp.max(jnp.abs(y - ref_bf16)))
        err_f32 = float(jnp.max(jnp.abs(y - ref_f32)))
        assert jnp.allclose(y, ref_bf16, atol=1e-2, rtol=1e-2), err_bf16
        assert jnp.allclose(y, ref_f32, atol=3e-2, rtol=3e-2), err_f32

    print("KERNEL_OK")
</pallas_src>

<mosaic_0001>
module attributes {stable_mosaic.version = 11 : i64} {
  func.func @_conv_single_k_kernel(%arg0: i32, %arg1: i32, %arg2: i32, %arg3: memref<1x1x512x128xbf16, #tpu.memory_space<vmem>>, %arg4: memref<1x128x128xbf16, #tpu.memory_space<vmem>>, %arg5: memref<1x1x8x512xbf16, #tpu.memory_space<vmem>>, %arg6: memref<1x1x8x128xf32, #tpu.memory_space<vmem>>, %arg7: memref<1x1x8x128xf32, #tpu.memory_space<vmem>>) attributes {dimension_semantics = [#tpu.dimension_semantics<arbitrary>, #tpu.dimension_semantics<parallel>, #tpu.dimension_semantics<parallel>], iteration_bounds = array<i64: 1, 2, 1>, scalar_prefetch = 0 : i64, scratch_operands = 0 : i64, tpu.core_type = #tpu.core_type<tc>, window_params = [{transform_indices = @transform_0, window_bounds = array<i64: 1, 1, 512, 128>}, {transform_indices = @transform_1, window_bounds = array<i64: 1, 128, 128>}, {transform_indices = @transform_2, window_bounds = array<i64: 1, 1, 8, 512>}, {transform_indices = @transform_3, window_bounds = array<i64: 1, 1, 8, 128>}, {transform_indices = @transform_4, window_bounds = array<i64: 1, 1, 8, 128>}]} {
    %c0 = arith.constant 0 : index
    %c0_0 = arith.constant 0 : index
    %c0_1 = arith.constant 0 : index
    %c0_2 = arith.constant 0 : index
    %0 = vector.load %arg3[%c0, %c0_0, %c0_1, %c0_2] : memref<1x1x512x128xbf16, #tpu.memory_space<vmem>>, vector<1x1x512x128xbf16>
    %1 = vector.shape_cast %0 : vector<1x1x512x128xbf16> to vector<512x128xbf16>
    %c0_3 = arith.constant 0 : index
    %c0_4 = arith.constant 0 : index
    %c0_5 = arith.constant 0 : index
    %2 = vector.load %arg4[%c0_3, %c0_4, %c0_5] : memref<1x128x128xbf16, #tpu.memory_space<vmem>>, vector<1x128x128xbf16>
    %3 = vector.shape_cast %2 : vector<1x128x128xbf16> to vector<128x128xbf16>
    %cst = arith.constant dense<0.000000e+00> : vector<512x128xf32>
    %4 = tpu.matmul %1, %3, %cst {dimension_numbers = #tpu.dot_dimension_numbers<[1], [0], [0], [1], [0, 0, 1, 1], [], []>} : vector<512x128xbf16>, vector<128x128xbf16>, vector<512x128xf32> -> vector<512x128xf32>
    %cst_6 = arith.constant dense<0.000000e+00> : vector<128xf32>
    %5 = vector.multi_reduction <add>, %4, %cst_6 [0] : vector<512x128xf32> to vector<128xf32>
    %6 = vector.shape_cast %5 : vector<128xf32> to vector<1x128xf32>
    %7 = vector.shape_cast %6 : vector<1x128xf32> to vector<1x128xf32>
    %8 = vector.broadcast %7 : vector<1x128xf32> to vector<8x128xf32>
    %c0_7 = arith.constant 0 : index
    %c0_8 = arith.constant 0 : index
    %c0_9 = arith.constant 0 : index
    %c0_10 = arith.constant 0 : index
    %9 = vector.load %arg6[%c0_7, %c0_8, %c0_9, %c0_10] : memref<1x1x8x128xf32, #tpu.memory_space<vmem>>, vector<1x1x8x128xf32>
    %10 = vector.shape_cast %9 : vector<1x1x8x128xf32> to vector<8x128xf32>
    %11 = vector.shape_cast %8 : vector<8x128xf32> to vector<1x1x8x128xf32>
    tpu.vector_store %arg6[%c0_7, %c0_8, %c0_9, %c0_10], %11 {strides = array<i32>} : memref<1x1x8x128xf32, #tpu.memory_space<vmem>>, vector<1x1x8x128xf32>,
    %12 = arith.mulf %4, %4 : vector<512x128xf32>
    %cst_11 = arith.constant dense<0.000000e+00> : vector<128xf32>
    %13 = vector.multi_reduction <add>, %12, %cst_11 [0] : vector<512x128xf32> to vector<128xf32>
    %14 = vector.shape_cast %13 : vector<128xf32> to vector<1x128xf32>
    %15 = vector.shape_cast %14 : vector<1x128xf32> to vector<1x128xf32>
    %16 = vector.broadcast %15 : vector<1x128xf32> to vector<8x128xf32>
    %c0_12 = arith.constant 0 : index
    %c0_13 = arith.constant 0 : index
    %c0_14 = arith.constant 0 : index
    %c0_15 = arith.constant 0 : index
    %17 = vector.load %arg7[%c0_12, %c0_13, %c0_14, %c0_15] : memref<1x1x8x128xf32, #tpu.memory_space<vmem>>, vector<1x1x8x128xf32>
    %18 = vector.shape_cast %17 : vector<1x1x8x128xf32> to vector<8x128xf32>
    %19 = vector.shape_cast %16 : vector<8x128xf32> to vector<1x1x8x128xf32>
    tpu.vector_store %arg7[%c0_12, %c0_13, %c0_14, %c0_15], %19 {strides = array<i32>} : memref<1x1x8x128xf32, #tpu.memory_space<vmem>>, vector<1x1x8x128xf32>,
    %20 = tpu.transpose %4, [1, 0] : vector<512x128xf32> -> vector<128x512xf32>
    %21 = vector.extract_strided_slice %20 {offsets = [0, 0], sizes = [8, 512], strides = [1, 1]} : vector<128x512xf32> to vector<8x512xf32>
    %22 = arith.truncf %21 : vector<8x512xf32> to vector<8x512xbf16>
    %c0_16 = arith.constant 0 : index
    %c0_17 = arith.constant 0 : index
    %c0_18 = arith.constant 0 : index
    %c0_19 = arith.constant 0 : index
    %23 = vector.load %arg5[%c0_16, %c0_17, %c0_18, %c0_19] : memref<1x1x8x512xbf16, #tpu.memory_space<vmem>>, vector<1x1x8x512xbf16>
    %24 = vector.shape_cast %23 : vector<1x1x8x512xbf16> to vector<8x512xbf16>
    %25 = vector.shape_cast %22 : vector<8x512xbf16> to vector<1x1x8x512xbf16>
    tpu.vector_store %arg5[%c0_16, %c0_17, %c0_18, %c0_19], %25 {strides = array<i32>} : memref<1x1x8x512xbf16, #tpu.memory_space<vmem>>, vector<1x1x8x512xbf16>,
    return
  }
  func.func @transform_0(%arg0: i32, %arg1: i32, %arg2: i32) -> (i32, i32, i32, i32) {
    %c0_i32 = arith.constant 0 : i32
    %c0_i32_0 = arith.constant 0 : i32
    return %arg0, %arg1, %arg2, %c0_i32 : i32, i32, i32, i32
  }
  func.func @transform_1(%arg0: i32, %arg1: i32, %arg2: i32) -> (i32, i32, i32) {
    %c0_i32 = arith.constant 0 : i32
    %c0_i32_0 = arith.constant 0 : i32
    %c0_i32_1 = arith.constant 0 : i32
    return %arg0, %c0_i32, %c0_i32_0 : i32, i32, i32
  }
  func.func @transform_2(%arg0: i32, %arg1: i32, %arg2: i32) -> (i32, i32, i32, i32) {
    %c0_i32 = arith.constant 0 : i32
    %c0_i32_0 = arith.constant 0 : i32
    return %arg0, %arg1, %c0_i32, %arg2 : i32, i32, i32, i32
  }
  func.func @transform_3(%arg0: i32, %arg1: i32, %arg2: i32) -> (i32, i32, i32, i32) {
    %c0_i32 = arith.constant 0 : i32
    %c0_i32_0 = arith.constant 0 : i32
    return %arg0, %arg1, %arg2, %c0_i32 : i32, i32, i32, i32
  }
  func.func @transform_4(%arg0: i32, %arg1: i32, %arg2: i32) -> (i32, i32, i32, i32) {
    %c0_i32 = arith.constant 0 : i32
    %c0_i32_0 = arith.constant 0 : i32
    return %arg0, %arg1, %arg2, %c0_i32 : i32, i32, i32, i32
  }
}

module attributes {stable_mosaic.version = 11 : i64} {
  func.func @_bn_relu_kernel(%arg0: i32, %arg1: i32, %arg2: i32, %arg3: memref<1x1x8x512xbf16, #tpu.memory_space<vmem>>, %arg4: memref<1x8x1xf32, #tpu.memory_space<vmem>>, %arg5: memref<1x8x1xf32, #tpu.memory_space<vmem>>, %arg6: memref<1x1x8x512xf32, #tpu.memory_space<vmem>>) attributes {dimension_semantics = [#tpu.dimension_semantics<arbitrary>, #tpu.dimension_semantics<parallel>, #tpu.dimension_semantics<parallel>], iteration_bounds = array<i64: 1, 2, 1>, scalar_prefetch = 0 : i64, scratch_operands = 0 : i64, tpu.core_type = #tpu.core_type<tc>, window_params = [{transform_indices = @transform_0, window_bounds = array<i64: 1, 1, 8, 512>}, {transform_indices = @transform_1, window_bounds = array<i64: 1, 8, 1>}, {transform_indices = @transform_2, window_bounds = array<i64: 1, 8, 1>}, {transform_indices = @transform_3, window_bounds = array<i64: 1, 1, 8, 512>}]} {
    %c0 = arith.constant 0 : index
    %c0_0 = arith.constant 0 : index
    %c0_1 = arith.constant 0 : index
    %c0_2 = arith.constant 0 : index
    %0 = vector.load %arg3[%c0, %c0_0, %c0_1, %c0_2] : memref<1x1x8x512xbf16, #tpu.memory_space<vmem>>, vector<1x1x8x512xbf16>
    %1 = vector.shape_cast %0 : vector<1x1x8x512xbf16> to vector<8x512xbf16>
    %2 = arith.extf %1 : vector<8x512xbf16> to vector<8x512xf32>
    %c0_3 = arith.constant 0 : index
    %c0_4 = arith.constant 0 : index
    %c0_5 = arith.constant 0 : index
    %3 = vector.load %arg4[%c0_3, %c0_4, %c0_5] : memref<1x8x1xf32, #tpu.memory_space<vmem>>, vector<1x8x1xf32>
    %4 = vector.shape_cast %3 : vector<1x8x1xf32> to vector<8x1xf32>
    %5 = vector.broadcast %4 : vector<8x1xf32> to vector<8x512xf32>
    %6 = arith.mulf %2, %5 : vector<8x512xf32>
    %c0_6 = arith.constant 0 : index
    %c0_7 = arith.constant 0 : index
    %c0_8 = arith.constant 0 : index
    %7 = vector.load %arg5[%c0_6, %c0_7, %c0_8] : memref<1x8x1xf32, #tpu.memory_space<vmem>>, vector<1x8x1xf32>
    %8 = vector.shape_cast %7 : vector<1x8x1xf32> to vector<8x1xf32>
    %9 = vector.broadcast %8 : vector<8x1xf32> to vector<8x512xf32>
    %10 = arith.addf %6, %9 : vector<8x512xf32>
    %cst = arith.constant 0.000000e+00 : f32
    %11 = vector.broadcast %cst : f32 to vector<8x512xf32>
    %12 = arith.maximumf %10, %11 : vector<8x512xf32>
    %c0_9 = arith.constant 0 : index
    %c0_10 = arith.constant 0 : index
    %c0_11 = arith.constant 0 : index
    %c0_12 = arith.constant 0 : index
    %13 = vector.load %arg6[%c0_9, %c0_10, %c0_11, %c0_12] : memref<1x1x8x512xf32, #tpu.memory_space<vmem>>, vector<1x1x8x512xf32>
    %14 = vector.shape_cast %13 : vector<1x1x8x512xf32> to vector<8x512xf32>
    %15 = vector.shape_cast %12 : vector<8x512xf32> to vector<1x1x8x512xf32>
    tpu.vector_store %arg6[%c0_9, %c0_10, %c0_11, %c0_12], %15 {strides = array<i32>} : memref<1x1x8x512xf32, #tpu.memory_space<vmem>>, vector<1x1x8x512xf32>,
    return
  }
  func.func @transform_0(%arg0: i32, %arg1: i32, %arg2: i32) -> (i32, i32, i32, i32) {
    %c0_i32 = arith.constant 0 : i32
    %c0_i32_0 = arith.constant 0 : i32
    return %arg0, %arg1, %c0_i32, %arg2 : i32, i32, i32, i32
  }
  func.func @transform_1(%arg0: i32, %arg1: i32, %arg2: i32) -> (i32, i32, i32) {
    %c0_i32 = arith.constant 0 : i32
    %c0_i32_0 = arith.constant 0 : i32
    %c0_i32_1 = arith.constant 0 : i32
    return %arg0, %c0_i32, %c0_i32_0 : i32, i32, i32
  }
  func.func @transform_2(%arg0: i32, %arg1: i32, %arg2: i32) -> (i32, i32, i32) {
    %c0_i32 = arith.constant 0 : i32
    %c0_i32_0 = arith.constant 0 : i32
    %c0_i32_1 = arith.constant 0 : i32
    return %arg0, %c0_i32, %c0_i32_0 : i32, i32, i32
  }
  func.func @transform_3(%arg0: i32, %arg1: i32, %arg2: i32) -> (i32, i32, i32, i32) {
    %c0_i32 = arith.constant 0 : i32
    %c0_i32_0 = arith.constant 0 : i32
    return %arg1, %arg0, %c0_i32, %arg2 : i32, i32, i32, i32
  }
}

</mosaic_0001>

<llo_original>
// kernel: x3d_basic_conv_forward.3
$region0: #{x3d_basic_conv_forward.3}
  #allocation0 [shape = 'u32[]', space=smem, size = 0x4, offset = 0x4, fixed_abs, tag = 'smem constant byte address 0x4 - core index']
  #allocation1 [shape = 'u32[144,128]{1,0:T(1,128)}', space=vmem, size = 0x12000, scoped, tag = 'internal scratch']
  %s0 = inlined_call_operand.vmem [shape: bf16[1,2,8,512], index: 0, kind: input, shape index: {}]
  %s1 = inlined_call_operand.vmem [shape: f32[1,8,1], index: 1, kind: input, shape index: {}]
  %s2 = inlined_call_operand.vmem [shape: f32[1,8,1], index: 2, kind: input, shape index: {}]
  %s3 = inlined_call_operand.vmem [shape: f32[2,1,8,512], index: 3, kind: output, shape index: {}]
  %s4 = sld [smem:[#allocation0]]
  $region45: #{x3d_basic_conv_forward.3} parent=0
    _
  %s6 = ssub.s32 1, %s4
  %s7 = scalar_select 0, %s6, %s4
  loop: start=0, step=1, limit=4
  $region2: #{x3d_basic_conv_forward.3} parent=0 // loop_pre_header
    _
  $region3: #{x3d_basic_conv_forward.3} parent=0 // loop_header
    %s9 = sphi 0, %s13
    %p10 = scmp.ge.s32.totalorder %s9, 4
    %s16 = sphi 0, %s35
    %s17 = sphi 0, %s31
    %s18 = sphi 0, %s27
    %s19 = sphi 0, %s16
    %s20 = sphi 0, %s17
    %s21 = sphi 0, %s18
    %s22 = sphi 0, %s19
    %s23 = sphi 0, %s20
    %s24 = sphi 0, %s21
    %s42 = sphi 0, %s44
    %s45 = sphi 0, %s42
    %s46 = sphi 0, %s45
    %s62 = sphi 0, %s46
    %s68 = sphi 0, %s70
    %s71 = sphi 0, %s68
    %s72 = sphi 0, %s71
    %s88 = sphi 0, %s72
    %s94 = sphi 0, %s96
    %s97 = sphi 0, %s94
    %s98 = sphi 0, %s97
    %s114 = sphi 0, %s98
    %s124 = sphi 0, %s126
    %s127 = sphi 0, %s124
    %s128 = sphi 0, %s127
    %s144 = sphi 0, %s128
  $region4: #{x3d_basic_conv_forward.3} parent=0 // loop_header_branch
    %12 = sbr.rel (%p10) target = $region8
  $region5: #{x3d_basic_conv_forward.3} parent=0 // loop_body
    %s14 = ssub.s32 %s9, 1
    %s15 = ssub.s32 %s9, 2
    %s25 = sadd.s32 1, %s18
    %p26 = scmp.ge.s32.totalorder %s25, 1
    %s27 = scalar_select %p26, 0, %s25
    %s28 = sadd.s32 1, %s17
    %s29 = scalar_select %p26, %s28, %s17
    %p30 = scmp.ge.s32.totalorder %s29, 2
    %s31 = scalar_select %p30, 0, %s29
    %s32 = sadd.s32 1, %s16
    %s33 = scalar_select %p30, %s32, %s16
    %p34 = scmp.ge.s32.totalorder %s33, 1
    %s35 = scalar_select %p34, 0, %s33
    %s36 = ssub.s32 %s16, %s35
    %s37 = ssub.s32 %s17, %s31
    %s38 = sor.u32 %s36, %s37
    %s39 = ssub.s32 %s18, %s27
    %s40 = sor.u32 %s38, %s39
    %p41 = scmp.eq.s32.totalorder %s40, 0
    %s43 = sadd.s32 %s42, 1
    %s44 = scalar_select %p41, %s42, %s43
    %p47 = pneg %p41
    %p48 = scmp.eq.s32.totalorder %s9, 1
    %p49 = por %p47, %p48
    %p50 = scmp.ne.s32.totalorder %s42, %s45
    %p51 = scmp.eq.s32.totalorder %s9, 0
    %p52 = por %p50, %p51
    %p53 = scmp.ne.s32.totalorder %s42, %s45
    %p54 = scmp.eq.s32.totalorder %s14, 1
    %p55 = por %p53, %p54
    %p56 = scmp.ne.s32.totalorder %s45, %s46
    %p57 = scmp.eq.s32.totalorder %s14, 0
    %p58 = por %p56, %p57
    %p59 = scmp.ne.s32.totalorder %s45, %s46
    %p60 = scmp.eq.s32.totalorder %s15, 1
    %p61 = por %p59, %p60
    %p63 = scmp.ne.s32.totalorder %s46, %s62
    %p64 = scmp.eq.s32.totalorder %s15, 0
    %p65 = por %p63, %p64
    %s66 = ssub.s32 %s16, %s35
    %p67 = scmp.eq.s32.totalorder %s66, 0
    %s69 = sadd.s32 %s68, 1
    %s70 = scalar_select %p67, %s68, %s69
    %p73 = pneg %p67
    %p74 = scmp.eq.s32.totalorder %s9, 1
    %p75 = por %p73, %p74
    %p76 = scmp.ne.s32.totalorder %s68, %s71
    %p77 = scmp.eq.s32.totalorder %s9, 0
    %p78 = por %p76, %p77
    %p79 = scmp.ne.s32.totalorder %s68, %s71
    %p80 = scmp.eq.s32.totalorder %s14, 1
    %p81 = por %p79, %p80
    %p82 = scmp.ne.s32.totalorder %s71, %s72
    %p83 = scmp.eq.s32.totalorder %s14, 0
    %p84 = por %p82, %p83
    %p85 = scmp.ne.s32.totalorder %s71, %s72
    %p86 = scmp.eq.s32.totalorder %s15, 1
    %p87 = por %p85, %p86
    %p89 = scmp.ne.s32.totalorder %s72, %s88
    %p90 = scmp.eq.s32.totalorder %s15, 0
    %p91 = por %p89, %p90
    %s92 = ssub.s32 %s16, %s35
    %p93 = scmp.eq.s32.totalorder %s92, 0
    %s95 = sadd.s32 %s94, 1
    %s96 = scalar_select %p93, %s94, %s95
    %p99 = pneg %p93
    %p100 = scmp.eq.s32.totalorder %s9, 1
    %p101 = por %p99, %p100
    %p102 = scmp.ne.s32.totalorder %s94, %s97
    %p103 = scmp.eq.s32.totalorder %s9, 0
    %p104 = por %p102, %p103
    %p105 = scmp.ne.s32.totalorder %s94, %s97
    %p106 = scmp.eq.s32.totalorder %s14, 1
    %p107 = por %p105, %p106
    %p108 = scmp.ne.s32.totalorder %s97, %s98
    %p109 = scmp.eq.s32.totalorder %s14, 0
    %p110 = por %p108, %p109
    %p111 = scmp.ne.s32.totalorder %s97, %s98
    %p112 = scmp.eq.s32.totalorder %s15, 1
    %p113 = por %p111, %p112
    %p115 = scmp.ne.s32.totalorder %s98, %s114
    %p116 = scmp.eq.s32.totalorder %s15, 0
    %p117 = por %p115, %p116
    %s118 = ssub.s32 %s17, %s31
    %s119 = ssub.s32 %s16, %s35
    %s120 = sor.u32 %s118, %s119
    %s121 = ssub.s32 %s18, %s27
    %s122 = sor.u32 %s120, %s121
    %p123 = scmp.eq.s32.totalorder %s122, 0
    %s125 = sadd.s32 %s124, 1
    %s126 = scalar_select %p123, %s124, %s125
    %p129 = pneg %p123
    %p130 = scmp.eq.s32.totalorder %s9, 1
    %p131 = por %p129, %p130
    %p132 = scmp.ne.s32.totalorder %s124, %s127
    %p133 = scmp.eq.s32.totalorder %s9, 0
    %p134 = por %p132, %p133
    %p135 = scmp.ne.s32.totalorder %s124, %s127
    %p136 = scmp.eq.s32.totalorder %s14, 1
    %p137 = por %p135, %p136
    %p138 = scmp.ne.s32.totalorder %s127, %s128
    %p139 = scmp.eq.s32.totalorder %s14, 0
    %p140 = por %p138, %p139
    %p141 = scmp.ne.s32.totalorder %s127, %s128
    %p142 = scmp.eq.s32.totalorder %s15, 1
    %p143 = por %p141, %p142
    %p145 = scmp.ne.s32.totalorder %s128, %s144
    %p146 = scmp.eq.s32.totalorder %s15, 0
    %p147 = por %p145, %p146
    %p148 = scmp.le.s32.totalorder 1, %s9
    %p149 = scmp.lt.s32.totalorder %s9, 3
    %p150 = pnand %p148, %p149
    %p151 = pneg %p150
    // Predicated region
    $region9: #{x3d_basic_conv_forward.3} parent=5 // pred_check
      _
    $region10: #{x3d_basic_conv_forward.3} parent=5 // pred_check_branch
      %153 = sbr.rel (%p150) target = $region12
    $region11: #{x3d_basic_conv_forward.3} parent=5 // pred_region
      %s154 = ssub.s32 %s9, 1
      // Predicated region
      $region13: #{x3d_basic_conv_forward.3} parent=11 // pred_check
        %p155 = pneg %p84
      $region14: #{x3d_basic_conv_forward.3} parent=11 // pred_check_branch
        %157 = sbr.rel (%p155) target = $region16
      $region15: #{x3d_basic_conv_forward.3} parent=11 // pred_region
        %p158 = scmp.lt.s32.totalorder %s19, 0
        %s159 = scalar_select %p158, %s19, 0
        %s160 = smul.addr %s159, 8
        %s161 = scalar_lea.vmem %s1, %s160
      $region16: #{x3d_basic_conv_forward.3} parent=11 // pred_fallthru
        _
      // Predicated region
      $region17: #{x3d_basic_conv_forward.3} parent=11 // pred_check
        %p162 = pneg %p110
      $region18: #{x3d_basic_conv_forward.3} parent=11 // pred_check_branch
        %164 = sbr.rel (%p162) target = $region20
      $region19: #{x3d_basic_conv_forward.3} parent=11 // pred_region
        %p165 = scmp.lt.s32.totalorder %s19, 0
        %s166 = scalar_select %p165, %s19, 0
        %s167 = smul.addr %s166, 8
        %s168 = scalar_lea.vmem %s2, %s167
      $region20: #{x3d_basic_conv_forward.3} parent=11 // pred_fallthru
        _
    $region12: #{x3d_basic_conv_forward.3} parent=5 // pred_fallthru
      _
    %p169 = scmp.lt.s32.totalorder %s9, 2
    // Predicated region
    $region21: #{x3d_basic_conv_forward.3} parent=5 // pred_check
      %p170 = pneg %p169
    $region22: #{x3d_basic_conv_forward.3} parent=5 // pred_check_branch
      %172 = sbr.rel (%p170) target = $region24
    $region23: #{x3d_basic_conv_forward.3} parent=5 // pred_region
      // Predicated region
      $region25: #{x3d_basic_conv_forward.3} parent=23 // pred_check
        %p173 = pneg %p52
      $region26: #{x3d_basic_conv_forward.3} parent=23 // pred_check_branch
        %175 = sbr.rel (%p173) target = $region28
      $region27: #{x3d_basic_conv_forward.3} parent=23 // pred_region
        %s176 = smul.u32 4, %s18
        %p177 = scmp.lt.s32.totalorder %s16, 0
        %s178 = scalar_select %p177, %s16, 0
        %p179 = scmp.lt.s32.totalorder %s17, 1
        %s180 = scalar_select %p179, %s17, 1
        %p181 = scmp.lt.s32.totalorder %s176, 3
        %s182 = scalar_select %p181, %s176, 3
        %s183 = smul.addr %s180, 4
        %s184 = sadd.s32 %s182, %s183
        %s185 = smul.addr %s178, 8
        %s186 = sadd.s32 %s184, %s185
        %s187 = smul.addr %s186, 4
        %s188 = scalar_lea.vmem %s0, %s187
        %s189 = smul.u32 4, %s18
      $region28: #{x3d_basic_conv_forward.3} parent=23 // pred_fallthru
        _
    $region24: #{x3d_basic_conv_forward.3} parent=5 // pred_fallthru
      _
    %p190 = scmp.le.s32.totalorder 1, %s9
    %p191 = scmp.lt.s32.totalorder %s9, 3
    %p192 = pnand %p190, %p191
    %p193 = pneg %p192
    // Predicated region
    $region29: #{x3d_basic_conv_forward.3} parent=5 // pred_check
      _
    $region30: #{x3d_basic_conv_forward.3} parent=5 // pred_check_branch
      %195 = sbr.rel (%p192) target = $region32
    $region31: #{x3d_basic_conv_forward.3} parent=5 // pred_region
      %s196 = ssub.s32 %s9, 1
      %s197 = smul.u32 4, %s21
      %p198 = scmp.lt.s32.totalorder %s19, 0
      %s199 = scalar_select %p198, %s19, 0
      %p200 = scmp.lt.s32.totalorder %s20, 1
      %s201 = scalar_select %p200, %s20, 1
      %p202 = scmp.lt.s32.totalorder %s197, 3
      %s203 = scalar_select %p202, %s197, 3
      %s204 = smul.addr %s201, 4
      %s205 = sadd.s32 %s203, %s204
      %s206 = smul.addr %s199, 8
      %s207 = sadd.s32 %s205, %s206
      %s208 = smul.addr %s207, 4
      %s209 = scalar_lea.vmem %s0, %s208
      %p210 = pneg %p58
      %p211 = pneg %p55
      %p212 = scmp.lt.s32.totalorder %s19, 0
      %s213 = scalar_select %p212, %s19, 0
      %s214 = smul.addr %s213, 8
      %s215 = scalar_lea.vmem %s1, %s214
      %p216 = pneg %p84
      %p217 = pneg %p81
      %p218 = scmp.lt.s32.totalorder %s19, 0
      %s219 = scalar_select %p218, %s19, 0
      %s220 = smul.addr %s219, 8
      %s221 = scalar_lea.vmem %s2, %s220
      %p222 = pneg %p110
      %p223 = pneg %p107
      %p224 = pneg %p140
      %p225 = pneg %p137
      %s226 = smul.u32 4, %s21
      %p227 = scmp.lt.s32.totalorder %s20, 1
      %s228 = scalar_select %p227, %s20, 1
      %p229 = scmp.lt.s32.totalorder %s19, 0
      %s230 = scalar_select %p229, %s19, 0
      %p231 = scmp.lt.s32.totalorder %s226, 3
      %s232 = scalar_select %p231, %s226, 3
      %s233 = smul.addr %s230, 4
      %s234 = sadd.s32 %s232, %s233
      %s235 = smul.addr %s228, 4
      %s236 = sadd.s32 %s234, %s235
      %s237 = smul.addr %s236, 8
      %s238 = scalar_lea.vmem %s3, %s237
      %s239 = smul.u32 4, %s21
      %p240 = scmp.lt.s32.totalorder %s19, 0
      %s241 = scalar_select %p240, %s19, 0
      %p242 = scmp.lt.s32.totalorder %s20, 1
      %s243 = scalar_select %p242, %s20, 1
      %p244 = scmp.lt.s32.totalorder %s239, 3
      %s245 = scalar_select %p244, %s239, 3
      %s246 = smul.addr %s243, 4
      %s247 = sadd.s32 %s245, %s246
      %s248 = smul.addr %s241, 8
      %s249 = sadd.s32 %s247, %s248
      %s250 = smul.addr %s249, 4
      %s251 = scalar_lea.vmem %s0, %s250
      %s252 = smul.u32 4, %s21
      %p253 = scmp.lt.s32.totalorder %s19, 0
      %s254 = scalar_select %p253, %s19, 0
      %s255 = smul.addr %s254, 8
      %s256 = scalar_lea.vmem %s1, %s255
      %p257 = scmp.lt.s32.totalorder %s19, 0
      %s258 = scalar_select %p257, %s19, 0
      %s259 = smul.addr %s258, 8
      %s260 = scalar_lea.vmem %s2, %s259
      %s261 = smul.u32 4, %s21
      %p262 = scmp.lt.s32.totalorder %s20, 1
      %s263 = scalar_select %p262, %s20, 1
      %p264 = scmp.lt.s32.totalorder %s19, 0
      %s265 = scalar_select %p264, %s19, 0
      %p266 = scmp.lt.s32.totalorder %s261, 3
      %s267 = scalar_select %p266, %s261, 3
      %s268 = smul.addr %s265, 4
      %s269 = sadd.s32 %s267, %s268
      %s270 = smul.addr %s263, 4
      %s271 = sadd.s32 %s269, %s270
      %s272 = smul.addr %s271, 8
      %s273 = scalar_lea.vmem %s3, %s272
      %s274 = smul.u32 4, %s21
      %v275 = vld [vmem:[%s251] sm:$0xff]
      %v276 = vld [vmem:[%s251 + $0x8] sm:$0xff]
      %v277 = vunpack.c.l.bf16 %v275
      %v278 = vunpack.c.h.bf16 %v275
      %v279 = vunpack.c.l.bf16 %v276
      %v280 = vunpack.c.h.bf16 %v276
      %v281 = vld [vmem:[%s256] sm:$0xff]
      %283 = vset.pattern.permute.xlu0 0
      %284 = vperm.xlu0 %283, %v281
      %v285 = vpop.permute.xlu0 %284
      %v287 = vmul.f32 %v277, %v285
      %v288 = vmul.f32 %v278, %v285
      %v289 = vmul.f32 %v279, %v285
      %v290 = vmul.f32 %v280, %v285
      %v291 = vld [vmem:[%s260] sm:$0xff]
      %293 = vset.pattern.permute.xlu0 0
      %294 = vperm.xlu0 %293, %v291
      %v295 = vpop.permute.xlu0 %294
      %v297 = vadd.f32 %v287, %v295
      %v298 = vadd.f32 %v288, %v295
      %v299 = vadd.f32 %v289, %v295
      %v300 = vadd.f32 %v290, %v295
      %v301 = vmax.f32 %v297, 0.0
      %v302 = vmax.f32 %v298, 0.0
      %v303 = vmax.f32 %v299, 0.0
      %v304 = vmax.f32 %v300, 0.0
      %305 = vst [vmem:[%s273] sm:$0xff] %v301
      %306 = vst [vmem:[%s273 + $0x8] sm:$0xff] %v302
      %307 = vst [vmem:[%s273 + $0x10] sm:$0xff] %v303
      %308 = vst [vmem:[%s273 + $0x18] sm:$0xff] %v304
      %s309 = smul.u32 4, %s21
      %p310 = scmp.lt.s32.totalorder %s20, 1
      %s311 = scalar_select %p310, %s20, 1
      %p312 = scmp.lt.s32.totalorder %s19, 0
      %s313 = scalar_select %p312, %s19, 0
      %p314 = scmp.lt.s32.totalorder %s309, 3
      %s315 = scalar_select %p314, %s309, 3
      %s316 = smul.addr %s313, 4
      %s317 = sadd.s32 %s315, %s316
      %s318 = smul.addr %s311, 4
      %s319 = sadd.s32 %s317, %s318
      %s320 = smul.addr %s319, 8
      %s321 = scalar_lea.vmem %s3, %s320
      // Predicated region
      $region33: #{x3d_basic_conv_forward.3} parent=31 // pred_check
        %p322 = pneg %p137
      $region34: #{x3d_basic_conv_forward.3} parent=31 // pred_check_branch
        %324 = sbr.rel (%p322) target = $region36
      $region35: #{x3d_basic_conv_forward.3} parent=31 // pred_region
        %s325 = smul.u32 4, %s21
      $region36: #{x3d_basic_conv_forward.3} parent=31 // pred_fallthru
        _
    $region32: #{x3d_basic_conv_forward.3} parent=5 // pred_fallthru
      _
    %p326 = scmp.le.s32.totalorder 2, %s9
    // Predicated region
    $region37: #{x3d_basic_conv_forward.3} parent=5 // pred_check
      %p327 = pneg %p326
    $region38: #{x3d_basic_conv_forward.3} parent=5 // pred_check_branch
      %329 = sbr.rel (%p327) target = $region40
    $region39: #{x3d_basic_conv_forward.3} parent=5 // pred_region
      %s330 = ssub.s32 %s9, 2
      // Predicated region
      $region41: #{x3d_basic_conv_forward.3} parent=39 // pred_check
        %p331 = pneg %p143
      $region42: #{x3d_basic_conv_forward.3} parent=39 // pred_check_branch
        %333 = sbr.rel (%p331) target = $region44
      $region43: #{x3d_basic_conv_forward.3} parent=39 // pred_region
        %s334 = smul.u32 4, %s24
        %p335 = scmp.lt.s32.totalorder %s23, 1
        %s336 = scalar_select %p335, %s23, 1
        %p337 = scmp.lt.s32.totalorder %s22, 0
        %s338 = scalar_select %p337, %s22, 0
        %p339 = scmp.lt.s32.totalorder %s334, 3
        %s340 = scalar_select %p339, %s334, 3
        %s341 = smul.addr %s338, 4
        %s342 = sadd.s32 %s340, %s341
        %s343 = smul.addr %s336, 4
        %s344 = sadd.s32 %s342, %s343
        %s345 = smul.addr %s344, 8
        %s346 = scalar_lea.vmem %s3, %s345
      $region44: #{x3d_basic_conv_forward.3} parent=39 // pred_fallthru
        _
    $region40: #{x3d_basic_conv_forward.3} parent=5 // pred_fallthru
      _
  $region6: #{x3d_basic_conv_forward.3} parent=0 // loop_footer
    %s13 = sadd.s32 1, %s9
  $region7: #{x3d_basic_conv_forward.3} parent=0 // loop_footer_branch
    %8 = sbr.rel target = $region3
  $region8: #{x3d_basic_conv_forward.3} parent=0 // loop_exit
    _

// kernel: x3d_basic_conv_forward.2
$region0: #{x3d_basic_conv_forward.2}
  #allocation0 [shape = 'u32[]', space=smem, size = 0x4, offset = 0x4, fixed_abs, tag = 'smem constant byte address 0x4 - core index']
  #allocation1 [shape = 'u32[144,128]{1,0:T(1,128)}', space=vmem, size = 0x12000, scoped, tag = 'internal scratch']
  %s0 = inlined_call_operand.vmem [shape: bf16[1,2,512,128], index: 0, kind: input, shape index: {}]
  %s1 = inlined_call_operand.vmem [shape: bf16[1,128,128], index: 1, kind: input, shape index: {}]
  %s2 = inlined_call_operand.vmem [shape: bf16[1,2,8,512], index: 2, kind: output, shape index: {0}]
  %s3 = inlined_call_operand.vmem [shape: f32[1,2,8,128], index: 3, kind: output, shape index: {1}]
  %s4 = inlined_call_operand.vmem [shape: f32[1,2,8,128], index: 4, kind: output, shape index: {2}]
  %5 = xla_tuple %s2, %s3, %s4
  %s6 = sld [smem:[#allocation0]]
  $region57: #{x3d_basic_conv_forward.2} parent=0
    _
  %s8 = ssub.s32 1, %s6
  %s9 = scalar_select 0, %s8, %s6
  loop: start=0, step=1, limit=4
  $region2: #{x3d_basic_conv_forward.2} parent=0 // loop_pre_header
    _
  $region3: #{x3d_basic_conv_forward.2} parent=0 // loop_header
    %s11 = sphi 0, %s15
    %p12 = scmp.ge.s32.totalorder %s11, 4
    %s18 = sphi 0, %s37
    %s19 = sphi 0, %s33
    %s20 = sphi 0, %s29
    %s21 = sphi 0, %s18
    %s22 = sphi 0, %s19
    %s23 = sphi 0, %s20
    %s24 = sphi 0, %s21
    %s25 = sphi 0, %s22
    %s26 = sphi 0, %s23
    %s44 = sphi 0, %s46
    %s47 = sphi 0, %s44
    %s48 = sphi 0, %s47
    %s64 = sphi 0, %s48
    %s70 = sphi 0, %s72
    %s73 = sphi 0, %s70
    %s74 = sphi 0, %s73
    %s90 = sphi 0, %s74
    %s100 = sphi 0, %s102
    %s103 = sphi 0, %s100
    %s104 = sphi 0, %s103
    %s120 = sphi 0, %s104
    %s130 = sphi 0, %s132
    %s133 = sphi 0, %s130
    %s134 = sphi 0, %s133
    %s150 = sphi 0, %s134
    %s160 = sphi 0, %s162
    %s163 = sphi 0, %s160
    %s164 = sphi 0, %s163
    %s180 = sphi 0, %s164
  $region4: #{x3d_basic_conv_forward.2} parent=0 // loop_header_branch
    %14 = sbr.rel (%p12) target = $region8
  $region5: #{x3d_basic_conv_forward.2} parent=0 // loop_body
    %s16 = ssub.s32 %s11, 1
    %s17 = ssub.s32 %s11, 2
    %s27 = sadd.s32 1, %s20
    %p28 = scmp.ge.s32.totalorder %s27, 1
    %s29 = scalar_select %p28, 0, %s27
    %s30 = sadd.s32 1, %s19
    %s31 = scalar_select %p28, %s30, %s19
    %p32 = scmp.ge.s32.totalorder %s31, 2
    %s33 = scalar_select %p32, 0, %s31
    %s34 = sadd.s32 1, %s18
    %s35 = scalar_select %p32, %s34, %s18
    %p36 = scmp.ge.s32.totalorder %s35, 1
    %s37 = scalar_select %p36, 0, %s35
    %s38 = ssub.s32 %s18, %s37
    %s39 = ssub.s32 %s19, %s33
    %s40 = sor.u32 %s38, %s39
    %s41 = ssub.s32 %s20, %s29
    %s42 = sor.u32 %s40, %s41
    %p43 = scmp.eq.s32.totalorder %s42, 0
    %s45 = sadd.s32 %s44, 1
    %s46 = scalar_select %p43, %s44, %s45
    %p49 = pneg %p43
    %p50 = scmp.eq.s32.totalorder %s11, 1
    %p51 = por %p49, %p50
    %p52 = scmp.ne.s32.totalorder %s44, %s47
    %p53 = scmp.eq.s32.totalorder %s11, 0
    %p54 = por %p52, %p53
    %p55 = scmp.ne.s32.totalorder %s44, %s47
    %p56 = scmp.eq.s32.totalorder %s16, 1
    %p57 = por %p55, %p56
    %p58 = scmp.ne.s32.totalorder %s47, %s48
    %p59 = scmp.eq.s32.totalorder %s16, 0
    %p60 = por %p58, %p59
    %p61 = scmp.ne.s32.totalorder %s47, %s48
    %p62 = scmp.eq.s32.totalorder %s17, 1
    %p63 = por %p61, %p62
    %p65 = scmp.ne.s32.totalorder %s48, %s64
    %p66 = scmp.eq.s32.totalorder %s17, 0
    %p67 = por %p65, %p66
    %s68 = ssub.s32 %s18, %s37
    %p69 = scmp.eq.s32.totalorder %s68, 0
    %s71 = sadd.s32 %s70, 1
    %s72 = scalar_select %p69, %s70, %s71
    %p75 = pneg %p69
    %p76 = scmp.eq.s32.totalorder %s11, 1
    %p77 = por %p75, %p76
    %p78 = scmp.ne.s32.totalorder %s70, %s73
    %p79 = scmp.eq.s32.totalorder %s11, 0
    %p80 = por %p78, %p79
    %p81 = scmp.ne.s32.totalorder %s70, %s73
    %p82 = scmp.eq.s32.totalorder %s16, 1
    %p83 = por %p81, %p82
    %p84 = scmp.ne.s32.totalorder %s73, %s74
    %p85 = scmp.eq.s32.totalorder %s16, 0
    %p86 = por %p84, %p85
    %p87 = scmp.ne.s32.totalorder %s73, %s74
    %p88 = scmp.eq.s32.totalorder %s17, 1
    %p89 = por %p87, %p88
    %p91 = scmp.ne.s32.totalorder %s74, %s90
    %p92 = scmp.eq.s32.totalorder %s17, 0
    %p93 = por %p91, %p92
    %s94 = ssub.s32 %s18, %s37
    %s95 = ssub.s32 %s19, %s33
    %s96 = sor.u32 %s94, %s95
    %s97 = ssub.s32 %s20, %s29
    %s98 = sor.u32 %s96, %s97
    %p99 = scmp.eq.s32.totalorder %s98, 0
    %s101 = sadd.s32 %s100, 1
    %s102 = scalar_select %p99, %s100, %s101
    %p105 = pneg %p99
    %p106 = scmp.eq.s32.totalorder %s11, 1
    %p107 = por %p105, %p106
    %p108 = scmp.ne.s32.totalorder %s100, %s103
    %p109 = scmp.eq.s32.totalorder %s11, 0
    %p110 = por %p108, %p109
    %p111 = scmp.ne.s32.totalorder %s100, %s103
    %p112 = scmp.eq.s32.totalorder %s16, 1
    %p113 = por %p111, %p112
    %p114 = scmp.ne.s32.totalorder %s103, %s104
    %p115 = scmp.eq.s32.totalorder %s16, 0
    %p116 = por %p114, %p115
    %p117 = scmp.ne.s32.totalorder %s103, %s104
    %p118 = scmp.eq.s32.totalorder %s17, 1
    %p119 = por %p117, %p118
    %p121 = scmp.ne.s32.totalorder %s104, %s120
    %p122 = scmp.eq.s32.totalorder %s17, 0
    %p123 = por %p121, %p122
    %s124 = ssub.s32 %s18, %s37
    %s125 = ssub.s32 %s19, %s33
    %s126 = sor.u32 %s124, %s125
    %s127 = ssub.s32 %s20, %s29
    %s128 = sor.u32 %s126, %s127
    %p129 = scmp.eq.s32.totalorder %s128, 0
    %s131 = sadd.s32 %s130, 1
    %s132 = scalar_select %p129, %s130, %s131
    %p135 = pneg %p129
    %p136 = scmp.eq.s32.totalorder %s11, 1
    %p137 = por %p135, %p136
    %p138 = scmp.ne.s32.totalorder %s130, %s133
    %p139 = scmp.eq.s32.totalorder %s11, 0
    %p140 = por %p138, %p139
    %p141 = scmp.ne.s32.totalorder %s130, %s133
    %p142 = scmp.eq.s32.totalorder %s16, 1
    %p143 = por %p141, %p142
    %p144 = scmp.ne.s32.totalorder %s133, %s134
    %p145 = scmp.eq.s32.totalorder %s16, 0
    %p146 = por %p144, %p145
    %p147 = scmp.ne.s32.totalorder %s133, %s134
    %p148 = scmp.eq.s32.totalorder %s17, 1
    %p149 = por %p147, %p148
    %p151 = scmp.ne.s32.totalorder %s134, %s150
    %p152 = scmp.eq.s32.totalorder %s17, 0
    %p153 = por %p151, %p152
    %s154 = ssub.s32 %s18, %s37
    %s155 = ssub.s32 %s19, %s33
    %s156 = sor.u32 %s154, %s155
    %s157 = ssub.s32 %s20, %s29
    %s158 = sor.u32 %s156, %s157
    %p159 = scmp.eq.s32.totalorder %s158, 0
    %s161 = sadd.s32 %s160, 1
    %s162 = scalar_select %p159, %s160, %s161
    %p165 = pneg %p159
    %p166 = scmp.eq.s32.totalorder %s11, 1
    %p167 = por %p165, %p166
    %p168 = scmp.ne.s32.totalorder %s160, %s163
    %p169 = scmp.eq.s32.totalorder %s11, 0
    %p170 = por %p168, %p169
    %p171 = scmp.ne.s32.totalorder %s160, %s163
    %p172 = scmp.eq.s32.totalorder %s16, 1
    %p173 = por %p171, %p172
    %p174 = scmp.ne.s32.totalorder %s163, %s164
    %p175 = scmp.eq.s32.totalorder %s16, 0
    %p176 = por %p174, %p175
    %p177 = scmp.ne.s32.totalorder %s163, %s164
    %p178 = scmp.eq.s32.totalorder %s17, 1
    %p179 = por %p177, %p178
    %p181 = scmp.ne.s32.totalorder %s164, %s180
    %p182 = scmp.eq.s32.totalorder %s17, 0
    %p183 = por %p181, %p182
    %p184 = scmp.le.s32.totalorder 1, %s11
    %p185 = scmp.lt.s32.totalorder %s11, 3
    %p186 = pnand %p184, %p185
    %p187 = pneg %p186
    // Predicated region
    $region9: #{x3d_basic_conv_forward.2} parent=5 // pred_check
      _
    $region10: #{x3d_basic_conv_forward.2} parent=5 // pred_check_branch
      %189 = sbr.rel (%p186) target = $region12
    $region11: #{x3d_basic_conv_forward.2} parent=5 // pred_region
      %s190 = ssub.s32 %s11, 1
      // Predicated region
      $region13: #{x3d_basic_conv_forward.2} parent=11 // pred_check
        %p191 = pneg %p86
      $region14: #{x3d_basic_conv_forward.2} parent=11 // pred_check_branch
        %193 = sbr.rel (%p191) target = $region16
      $region15: #{x3d_basic_conv_forward.2} parent=11 // pred_region
        %p194 = scmp.lt.s32.totalorder %s21, 0
        %s195 = scalar_select %p194, %s21, 0
        %s196 = smul.addr %s195, 16
        %s197 = smul.addr %s196, 4
        %s198 = scalar_lea.vmem %s1, %s197
      $region16: #{x3d_basic_conv_forward.2} parent=11 // pred_fallthru
        _
    $region12: #{x3d_basic_conv_forward.2} parent=5 // pred_fallthru
      _
    %p199 = scmp.lt.s32.totalorder %s11, 2
    // Predicated region
    $region17: #{x3d_basic_conv_forward.2} parent=5 // pred_check
      %p200 = pneg %p199
    $region18: #{x3d_basic_conv_forward.2} parent=5 // pred_check_branch
      %202 = sbr.rel (%p200) target = $region20
    $region19: #{x3d_basic_conv_forward.2} parent=5 // pred_region
      // Predicated region
      $region21: #{x3d_basic_conv_forward.2} parent=19 // pred_check
        %p203 = pneg %p54
      $region22: #{x3d_basic_conv_forward.2} parent=19 // pred_check_branch
        %205 = sbr.rel (%p203) target = $region24
      $region23: #{x3d_basic_conv_forward.2} parent=19 // pred_region
        %s206 = smul.u32 64, %s20
        %p207 = scmp.lt.s32.totalorder %s18, 0
        %s208 = scalar_select %p207, %s18, 0
        %p209 = scmp.lt.s32.totalorder %s19, 1
        %s210 = scalar_select %p209, %s19, 1
        %p211 = scmp.lt.s32.totalorder %s206, 63
        %s212 = scalar_select %p211, %s206, 63
        %s213 = smul.addr %s210, 64
        %s214 = sadd.s32 %s212, %s213
        %s215 = smul.addr %s208, 128
        %s216 = sadd.s32 %s214, %s215
        %s217 = smul.addr %s216, 4
        %s218 = scalar_lea.vmem %s0, %s217
        %s219 = smul.u32 64, %s20
      $region24: #{x3d_basic_conv_forward.2} parent=19 // pred_fallthru
        _
    $region20: #{x3d_basic_conv_forward.2} parent=5 // pred_fallthru
      _
    %p220 = scmp.le.s32.totalorder 1, %s11
    %p221 = scmp.lt.s32.totalorder %s11, 3
    %p222 = pnand %p220, %p221
    %p223 = pneg %p222
    // Predicated region
    $region25: #{x3d_basic_conv_forward.2} parent=5 // pred_check
      _
    $region26: #{x3d_basic_conv_forward.2} parent=5 // pred_check_branch
      %225 = sbr.rel (%p222) target = $region28
    $region27: #{x3d_basic_conv_forward.2} parent=5 // pred_region
      %s226 = ssub.s32 %s11, 1
      %s227 = smul.u32 64, %s23
      %p228 = scmp.lt.s32.totalorder %s21, 0
      %s229 = scalar_select %p228, %s21, 0
      %p230 = scmp.lt.s32.totalorder %s22, 1
      %s231 = scalar_select %p230, %s22, 1
      %p232 = scmp.lt.s32.totalorder %s227, 63
      %s233 = scalar_select %p232, %s227, 63
      %s234 = smul.addr %s231, 64
      %s235 = sadd.s32 %s233, %s234
      %s236 = smul.addr %s229, 128
      %s237 = sadd.s32 %s235, %s236
      %s238 = smul.addr %s237, 4
      %s239 = scalar_lea.vmem %s0, %s238
      %p240 = pneg %p60
      %p241 = pneg %p57
      %p242 = scmp.lt.s32.totalorder %s21, 0
      %s243 = scalar_select %p242, %s21, 0
      %s244 = smul.addr %s243, 16
      %s245 = smul.addr %s244, 4
      %s246 = scalar_lea.vmem %s1, %s245
      %p247 = pneg %p86
      %p248 = pneg %p83
      %p249 = pneg %p116
      %p250 = pneg %p113
      %s251 = smul.u32 4, %s23
      %p252 = scmp.lt.s32.totalorder %s21, 0
      %s253 = scalar_select %p252, %s21, 0
      %p254 = scmp.lt.s32.totalorder %s22, 1
      %s255 = scalar_select %p254, %s22, 1
      %p256 = scmp.lt.s32.totalorder %s251, 3
      %s257 = scalar_select %p256, %s251, 3
      %s258 = smul.addr %s255, 4
      %s259 = sadd.s32 %s257, %s258
      %s260 = smul.addr %s253, 8
      %s261 = sadd.s32 %s259, %s260
      %s262 = smul.addr %s261, 4
      %s263 = scalar_lea.vmem %s2, %s262
      %p264 = pneg %p146
      %p265 = pneg %p143
      %p266 = scmp.lt.s32.totalorder %s21, 0
      %s267 = scalar_select %p266, %s21, 0
      %p268 = scmp.lt.s32.totalorder %s22, 1
      %s269 = scalar_select %p268, %s22, 1
      %p270 = scmp.lt.s32.totalorder %s23, 0
      %s271 = scalar_select %p270, %s23, 0
      %s272 = sadd.s32 %s271, %s269
      %s273 = smul.addr %s267, 2
      %s274 = sadd.s32 %s272, %s273
      %s275 = smul.addr %s274, 8
      %s276 = scalar_lea.vmem %s3, %s275
      %p277 = pneg %p176
      %p278 = pneg %p173
      %p279 = scmp.lt.s32.totalorder %s21, 0
      %s280 = scalar_select %p279, %s21, 0
      %p281 = scmp.lt.s32.totalorder %s22, 1
      %s282 = scalar_select %p281, %s22, 1
      %p283 = scmp.lt.s32.totalorder %s23, 0
      %s284 = scalar_select %p283, %s23, 0
      %s285 = sadd.s32 %s284, %s282
      %s286 = smul.addr %s280, 2
      %s287 = sadd.s32 %s285, %s286
      %s288 = smul.addr %s287, 8
      %s289 = scalar_lea.vmem %s4, %s288
      %s290 = smul.u32 64, %s23
      %p291 = scmp.lt.s32.totalorder %s21, 0
      %s292 = scalar_select %p291, %s21, 0
      %p293 = scmp.lt.s32.totalorder %s22, 1
      %s294 = scalar_select %p293, %s22, 1
      %p295 = scmp.lt.s32.totalorder %s290, 63
      %s296 = scalar_select %p295, %s290, 63
      %s297 = smul.addr %s294, 64
      %s298 = sadd.s32 %s296, %s297
      %s299 = smul.addr %s292, 128
      %s300 = sadd.s32 %s298, %s299
      %s301 = smul.addr %s300, 4
      %s302 = scalar_lea.vmem %s0, %s301
      %s303 = smul.u32 64, %s23
      %p304 = scmp.lt.s32.totalorder %s21, 0
      %s305 = scalar_select %p304, %s21, 0
      %s306 = smul.addr %s305, 16
      %s307 = smul.addr %s306, 4
      %s308 = scalar_lea.vmem %s1, %s307
      %s309 = smul.u32 4, %s23
      %p310 = scmp.lt.s32.totalorder %s21, 0
      %s311 = scalar_select %p310, %s21, 0
      %p312 = scmp.lt.s32.totalorder %s22, 1
      %s313 = scalar_select %p312, %s22, 1
      %p314 = scmp.lt.s32.totalorder %s309, 3
      %s315 = scalar_select %p314, %s309, 3
      %s316 = smul.addr %s313, 4
      %s317 = sadd.s32 %s315, %s316
      %s318 = smul.addr %s311, 8
      %s319 = sadd.s32 %s317, %s318
      %s320 = smul.addr %s319, 4
      %s321 = scalar_lea.vmem %s2, %s320
      %s322 = smul.u32 4, %s23
      %p323 = scmp.lt.s32.totalorder %s21, 0
      %s324 = scalar_select %p323, %s21, 0
      %p325 = scmp.lt.s32.totalorder %s22, 1
      %s326 = scalar_select %p325, %s22, 1
      %p327 = scmp.lt.s32.totalorder %s23, 0
      %s328 = scalar_select %p327, %s23, 0
      %s329 = sadd.s32 %s328, %s326
      %s330 = smul.addr %s324, 2
      %s331 = sadd.s32 %s329, %s330
      %s332 = smul.addr %s331, 8
      %s333 = scalar_lea.vmem %s3, %s332
      %p334 = scmp.lt.s32.totalorder %s21, 0
      %s335 = scalar_select %p334, %s21, 0
      %p336 = scmp.lt.s32.totalorder %s22, 1
      %s337 = scalar_select %p336, %s22, 1
      %p338 = scmp.lt.s32.totalorder %s23, 0
      %s339 = scalar_select %p338, %s23, 0
      %s340 = sadd.s32 %s339, %s337
      %s341 = smul.addr %s335, 2
      %s342 = sadd.s32 %s340, %s341
      %s343 = smul.addr %s342, 8
      %s344 = scalar_lea.vmem %s4, %s343
      %v346 = vld [vmem:[%s302] sm:$0xf]
      %v347 = vld [vmem:[%s302 + $0x4] sm:$0xf]
      %v348 = vld [vmem:[%s302 + $0x8] sm:$0xf]
      %v349 = vld [vmem:[%s302 + $0xc] sm:$0xf]
      %v350 = vld [vmem:[%s302 + $0x10] sm:$0xf]
      %v351 = vld [vmem:[%s302 + $0x14] sm:$0xf]
      %v352 = vld [vmem:[%s302 + $0x18] sm:$0xf]
      %v353 = vld [vmem:[%s302 + $0x1c] sm:$0xf]
      %v354 = vld [vmem:[%s302 + $0x20] sm:$0xf]
      %v355 = vld [vmem:[%s302 + $0x24] sm:$0xf]
      %v356 = vld [vmem:[%s302 + $0x28] sm:$0xf]
      %v357 = vld [vmem:[%s302 + $0x2c] sm:$0xf]
      %v358 = vld [vmem:[%s302 + $0x30] sm:$0xf]
      %v359 = vld [vmem:[%s302 + $0x34] sm:$0xf]
      %v360 = vld [vmem:[%s302 + $0x38] sm:$0xf]
      %v361 = vld [vmem:[%s302 + $0x3c] sm:$0xf]
      %v362 = vld [vmem:[%s302 + $0x40] sm:$0xf]
      %v363 = vld [vmem:[%s302 + $0x44] sm:$0xf]
      %v364 = vld [vmem:[%s302 + $0x48] sm:$0xf]
      %v365 = vld [vmem:[%s302 + $0x4c] sm:$0xf]
      %v366 = vld [vmem:[%s302 + $0x50] sm:$0xf]
      %v367 = vld [vmem:[%s302 + $0x54] sm:$0xf]
      %v368 = vld [vmem:[%s302 + $0x58] sm:$0xf]
      %v369 = vld [vmem:[%s302 + $0x5c] sm:$0xf]
      %v370 = vld [vmem:[%s302 + $0x60] sm:$0xf]
      %v371 = vld [vmem:[%s302 + $0x64] sm:$0xf]
      %v372 = vld [vmem:[%s302 + $0x68] sm:$0xf]
      %v373 = vld [vmem:[%s302 + $0x6c] sm:$0xf]
      %v374 = vld [vmem:[%s302 + $0x70] sm:$0xf]
      %v375 = vld [vmem:[%s302 + $0x74] sm:$0xf]
      %v376 = vld [vmem:[%s302 + $0x78] sm:$0xf]
      %v377 = vld [vmem:[%s302 + $0x7c] sm:$0xf]
      %v378 = vld [vmem:[%s302 + $0x80] sm:$0xf]
      %v379 = vld [vmem:[%s302 + $0x84] sm:$0xf]
      %v380 = vld [vmem:[%s302 + $0x88] sm:$0xf]
      %v381 = vld [vmem:[%s302 + $0x8c] sm:$0xf]
      %v382 = vld [vmem:[%s302 + $0x90] sm:$0xf]
      %v383 = vld [vmem:[%s302 + $0x94] sm:$0xf]
      %v384 = vld [vmem:[%s302 + $0x98] sm:$0xf]
      %v385 = vld [vmem:[%s302 + $0x9c] sm:$0xf]
      %v386 = vld [vmem:[%s302 + $0xa0] sm:$0xf]
      %v387 = vld [vmem:[%s302 + $0xa4] sm:$0xf]
      %v388 = vld [vmem:[%s302 + $0xa8] sm:$0xf]
      %v389 = vld [vmem:[%s302 + $0xac] sm:$0xf]
      %v390 = vld [vmem:[%s302 + $0xb0] sm:$0xf]
      %v391 = vld [vmem:[%s302 + $0xb4] sm:$0xf]
      %v392 = vld [vmem:[%s302 + $0xb8] sm:$0xf]
      %v393 = vld [vmem:[%s302 + $0xbc] sm:$0xf]
      %v394 = vld [vmem:[%s302 + $0xc0] sm:$0xf]
      %v395 = vld [vmem:[%s302 + $0xc4] sm:$0xf]
      %v396 = vld [vmem:[%s302 + $0xc8] sm:$0xf]
      %v397 = vld [vmem:[%s302 + $0xcc] sm:$0xf]
      %v398 = vld [vmem:[%s302 + $0xd0] sm:$0xf]
      %v399 = vld [vmem:[%s302 + $0xd4] sm:$0xf]
      %v400 = vld [vmem:[%s302 + $0xd8] sm:$0xf]
      %v401 = vld [vmem:[%s302 + $0xdc] sm:$0xf]
      %v402 = vld [vmem:[%s302 + $0xe0] sm:$0xf]
      %v403 = vld [vmem:[%s302 + $0xe4] sm:$0xf]
      %v404 = vld [vmem:[%s302 + $0xe8] sm:$0xf]
      %v405 = vld [vmem:[%s302 + $0xec] sm:$0xf]
      %v406 = vld [vmem:[%s302 + $0xf0] sm:$0xf]
      %v407 = vld [vmem:[%s302 + $0xf4] sm:$0xf]
      %v408 = vld [vmem:[%s302 + $0xf8] sm:$0xf]
      %v409 = vld [vmem:[%s302 + $0xfc] sm:$0xf]
      %v410 = vld [vmem:[%s308] sm:$0xf]
      %v411 = vld [vmem:[%s308 + $0x4] sm:$0xf]
      %v412 = vld [vmem:[%s308 + $0x8] sm:$0xf]
      %v413 = vld [vmem:[%s308 + $0xc] sm:$0xf]
      %v414 = vld [vmem:[%s308 + $0x10] sm:$0xf]
      %v415 = vld [vmem:[%s308 + $0x14] sm:$0xf]
      %v416 = vld [vmem:[%s308 + $0x18] sm:$0xf]
      %v417 = vld [vmem:[%s308 + $0x1c] sm:$0xf]
      %v418 = vld [vmem:[%s308 + $0x20] sm:$0xf]
      %v419 = vld [vmem:[%s308 + $0x24] sm:$0xf]
      %v420 = vld [vmem:[%s308 + $0x28] sm:$0xf]
      %v421 = vld [vmem:[%s308 + $0x2c] sm:$0xf]
      %v422 = vld [vmem:[%s308 + $0x30] sm:$0xf]
      %v423 = vld [vmem:[%s308 + $0x34] sm:$0xf]
      %v424 = vld [vmem:[%s308 + $0x38] sm:$0xf]
      %v425 = vld [vmem:[%s308 + $0x3c] sm:$0xf]
      %v490 = vunpack.c.l.b16 %v346
      %v491 = vunpack.c.l.b16 %v347
      %v492 = vunpack.c.l.b16 %v348
      %v493 = vunpack.c.l.b16 %v349
      %v494 = vunpack.c.l.b16 %v350
      %v495 = vunpack.c.l.b16 %v351
      %v496 = vunpack.c.l.b16 %v352
      %v497 = vunpack.c.l.b16 %v353
      %v498 = vunpack.c.l.b16 %v354
      %v499 = vunpack.c.l.b16 %v355
      %v500 = vunpack.c.l.b16 %v356
      %v501 = vunpack.c.l.b16 %v357
      %v502 = vunpack.c.l.b16 %v358
      %v503 = vunpack.c.l.b16 %v359
      %v504 = vunpack.c.l.b16 %v360
      %v505 = vunpack.c.l.b16 %v361
      %v506 = vunpack.c.l.b16 %v362
      %v507 = vunpack.c.l.b16 %v363
      %v508 = vunpack.c.l.b16 %v364
      %v509 = vunpack.c.l.b16 %v365
      %v510 = vunpack.c.l.b16 %v366
      %v511 = vunpack.c.l.b16 %v367
      %v512 = vunpack.c.l.b16 %v368
      %v513 = vunpack.c.l.b16 %v369
      %v514 = vunpack.c.l.b16 %v370
      %v515 = vunpack.c.l.b16 %v371
      %v516 = vunpack.c.l.b16 %v372
      %v517 = vunpack.c.l.b16 %v373
      %v518 = vunpack.c.l.b16 %v374
      %v519 = vunpack.c.l.b16 %v375
      %v520 = vunpack.c.l.b16 %v376
      %v521 = vunpack.c.l.b16 %v377
      %v522 = vunpack.c.l.b16 %v378
      %v523 = vunpack.c.l.b16 %v379
      %v524 = vunpack.c.l.b16 %v380
      %v525 = vunpack.c.l.b16 %v381
      %v526 = vunpack.c.l.b16 %v382
      %v527 = vunpack.c.l.b16 %v383
      %v528 = vunpack.c.l.b16 %v384
      %v529 = vunpack.c.l.b16 %v385
      %v530 = vunpack.c.l.b16 %v386
      %v531 = vunpack.c.l.b16 %v387
      %v532 = vunpack.c.l.b16 %v388
      %v533 = vunpack.c.l.b16 %v389
      %v534 = vunpack.c.l.b16 %v390
      %v535 = vunpack.c.l.b16 %v391
      %v536 = vunpack.c.l.b16 %v392
      %v537 = vunpack.c.l.b16 %v393
      %v538 = vunpack.c.l.b16 %v394
      %v539 = vunpack.c.l.b16 %v395
      %v540 = vunpack.c.l.b16 %v396
      %v541 = vunpack.c.l.b16 %v397
      %v542 = vunpack.c.l.b16 %v398
      %v543 = vunpack.c.l.b16 %v399
      %v544 = vunpack.c.l.b16 %v400
      %v545 = vunpack.c.l.b16 %v401
      %v546 = vunpack.c.l.b16 %v402
      %v547 = vunpack.c.l.b16 %v403
      %v548 = vunpack.c.l.b16 %v404
      %v549 = vunpack.c.l.b16 %v405
      %v550 = vunpack.c.l.b16 %v406
      %v551 = vunpack.c.l.b16 %v407
      %v552 = vunpack.c.l.b16 %v408
      %v553 = vunpack.c.l.b16 %v409
      %v554 = vpack.c.b16 %v491, %v490
      %v555 = vpack.c.b16 %v493, %v492
      %v556 = vpack.c.b16 %v495, %v494
      %v557 = vpack.c.b16 %v497, %v496
      %v558 = vpack.c.b16 %v499, %v498
      %v559 = vpack.c.b16 %v501, %v500
      %v560 = vpack.c.b16 %v503, %v502
      %v561 = vpack.c.b16 %v505, %v504
      %v562 = vpack.c.b16 %v507, %v506
      %v563 = vpack.c.b16 %v509, %v508
      %v564 = vpack.c.b16 %v511, %v510
      %v565 = vpack.c.b16 %v513, %v512
      %v566 = vpack.c.b16 %v515, %v514
      %v567 = vpack.c.b16 %v517, %v516
      %v568 = vpack.c.b16 %v519, %v518
      %v569 = vpack.c.b16 %v521, %v520
      %v570 = vpack.c.b16 %v523, %v522
      %v571 = vpack.c.b16 %v525, %v524
      %v572 = vpack.c.b16 %v527, %v526
      %v573 = vpack.c.b16 %v529, %v528
      %v574 = vpack.c.b16 %v531, %v530
      %v575 = vpack.c.b16 %v533, %v532
      %v576 = vpack.c.b16 %v535, %v534
      %v577 = vpack.c.b16 %v537, %v536
      %v578 = vpack.c.b16 %v539, %v538
      %v579 = vpack.c.b16 %v541, %v540
      %v580 = vpack.c.b16 %v543, %v542
      %v581 = vpack.c.b16 %v545, %v544
      %v582 = vpack.c.b16 %v547, %v546
      %v583 = vpack.c.b16 %v549, %v548
      %v584 = vpack.c.b16 %v551, %v550
      %v585 = vpack.c.b16 %v553, %v552
      %v634 = vunpack.c.l.b16 %v410
      %v635 = vunpack.c.l.b16 %v411
      %v636 = vunpack.c.l.b16 %v412
      %v637 = vunpack.c.l.b16 %v413
      %v638 = vunpack.c.l.b16 %v414
      %v639 = vunpack.c.l.b16 %v415
      %v640 = vunpack.c.l.b16 %v416
      %v641 = vunpack.c.l.b16 %v417
      %v642 = vunpack.c.l.b16 %v418
      %v643 = vunpack.c.l.b16 %v419
      %v644 = vunpack.c.l.b16 %v420
      %v645 = vunpack.c.l.b16 %v421
      %v646 = vunpack.c.l.b16 %v422
      %v647 = vunpack.c.l.b16 %v423
      %v648 = vunpack.c.l.b16 %v424
      %v649 = vunpack.c.l.b16 %v425
      %v650 = vpack.c.b16 %v635, %v634
      %v651 = vpack.c.b16 %v637, %v636
      %v652 = vpack.c.b16 %v639, %v638
      %v653 = vpack.c.b16 %v641, %v640
      %v654 = vpack.c.b16 %v643, %v642
      %v655 = vpack.c.b16 %v645, %v644
      %v656 = vpack.c.b16 %v647, %v646
      %v657 = vpack.c.b16 %v649, %v648
      %666 = vmatprep.subr.bf16.mxu0 0
      %667 = vmatpush1.bf16.msra.mxu0 %v650
      %668 = vmatprep.subr.bf16.mxu0 0
      %669 = vmatpush1.bf16.msra.mxu0 %v651
      %670 = vmatprep.subr.bf16.mxu0 0
      %671 = vmatpush1.bf16.msra.mxu0 %v652
      %672 = vmatprep.subr.bf16.mxu0 0
      %673 = vmatpush1.bf16.msra.mxu0 %v653
      %674 = vmatprep.subr.bf16.mxu0 0
      %675 = vmatpush1.bf16.msra.mxu0 %v654
      %676 = vmatprep.subr.bf16.mxu0 0
      %677 = vmatpush1.bf16.msra.mxu0 %v655
      %678 = vmatprep.subr.bf16.mxu0 0
      %679 = vmatpush1.bf16.msra.mxu0 %v656
      %680 = vmatprep.subr.bf16.mxu0 0
      %681 = vmatpush1.bf16.msra.mxu0 %v657
      %682 = vmatprep.subr.bf16.mxu0 0
      %683 = vmatpush1.bf16.msra.mxu0 0
      %684 = vmatprep.subr.bf16.mxu0 0
      %685 = vmatpush1.bf16.msra.mxu0 0
      %686 = vmatprep.subr.bf16.mxu0 0
      %687 = vmatpush1.bf16.msra.mxu0 0
      %688 = vmatprep.subr.bf16.mxu0 0
      %689 = vmatpush1.bf16.msra.mxu0 0
      %690 = vmatprep.subr.bf16.mxu0 0
      %691 = vmatpush1.bf16.msra.mxu0 0
      %692 = vmatprep.subr.bf16.mxu0 0
      %693 = vmatpush1.bf16.msra.mxu0 0
      %694 = vmatprep.subr.bf16.mxu0 0
      %695 = vmatpush1.bf16.msra.mxu0 0
      %696 = vmatprep.subr.bf16.mxu0 0
      %697 = vmatpush1.bf16.msra.mxu0 0
      %698 = vmatprep.mubr.bf16.mxu0 0
      %699 = vmatmul.mubr.bf16.gmra.mrb[0].mxu0 %v554
      %v700 = vpop.f32.mrb[0].mxu0
      %v701 = vadd.f32 0.0, %v700
      %v702 = vpop.f32.mrb[0].mxu0
      %v703 = vpop.f32.mrb[0].mxu0
      %v704 = vadd.f32 0.0, %v703
      %v705 = vpop.f32.mrb[0].mxu0
      %706 = vmatprep.mubr.bf16.mxu0 0
      %707 = vmatmul.mubr.bf16.gmra.mrb[0].mxu0 %v555
      %v708 = vpop.f32.mrb[0].mxu0
      %v709 = vadd.f32 0.0, %v708
      %v710 = vpop.f32.mrb[0].mxu0
      %v711 = vpop.f32.mrb[0].mxu0
      %v712 = vadd.f32 0.0, %v711
      %v713 = vpop.f32.mrb[0].mxu0
      %714 = vmatprep.mubr.bf16.mxu0 0
      %715 = vmatmul.mubr.bf16.gmra.mrb[0].mxu0 %v556
      %v716 = vpop.f32.mrb[0].mxu0
      %v717 = vadd.f32 0.0, %v716
      %v718 = vpop.f32.mrb[0].mxu0
      %v719 = vpop.f32.mrb[0].mxu0
      %v720 = vadd.f32 0.0, %v719
      %v721 = vpop.f32.mrb[0].mxu0
      %722 = vmatprep.mubr.bf16.mxu0 0
      %723 = vmatmul.mubr.bf16.gmra.mrb[0].mxu0 %v557
      %v724 = vpop.f32.mrb[0].mxu0
      %v725 = vadd.f32 0.0, %v724
      %v726 = vpop.f32.mrb[0].mxu0
      %v727 = vpop.f32.mrb[0].mxu0
      %v728 = vadd.f32 0.0, %v727
      %v729 = vpop.f32.mrb[0].mxu0
      %730 = vmatprep.mubr.bf16.mxu0 0
      %731 = vmatmul.mubr.bf16.gmra.mrb[0].mxu0 %v558
      %v732 = vpop.f32.mrb[0].mxu0
      %v733 = vadd.f32 0.0, %v732
      %v734 = vpop.f32.mrb[0].mxu0
      %v735 = vpop.f32.mrb[0].mxu0
      %v736 = vadd.f32 0.0, %v735
      %v737 = vpop.f32.mrb[0].mxu0
      %738 = vmatprep.mubr.bf16.mxu0 0
      %739 = vmatmul.mubr.bf16.gmra.mrb[0].mxu0 %v559
      %v740 = vpop.f32.mrb[0].mxu0
      %v741 = vadd.f32 0.0, %v740
      %v742 = vpop.f32.mrb[0].mxu0
      %v743 = vpop.f32.mrb[0].mxu0
      %v744 = vadd.f32 0.0, %v743
      %v745 = vpop.f32.mrb[0].mxu0
      %746 = vmatprep.mubr.bf16.mxu0 0
      %747 = vmatmul.mubr.bf16.gmra.mrb[0].mxu0 %v560
      %v748 = vpop.f32.mrb[0].mxu0
      %v749 = vadd.f32 0.0, %v748
      %v750 = vpop.f32.mrb[0].mxu0
      %v751 = vpop.f32.mrb[0].mxu0
      %v752 = vadd.f32 0.0, %v751
      %v753 = vpop.f32.mrb[0].mxu0
      %754 = vmatprep.mubr.bf16.mxu0 0
      %755 = vmatmul.mubr.bf16.gmra.mrb[0].mxu0 %v561
      %v756 = vpop.f32.mrb[0].mxu0
      %v757 = vadd.f32 0.0, %v756
      %v758 = vpop.f32.mrb[0].mxu0
      %v759 = vpop.f32.mrb[0].mxu0
      %v760 = vadd.f32 0.0, %v759
      %v761 = vpop.f32.mrb[0].mxu0
      %762 = vmatprep.mubr.bf16.mxu0 0
      %763 = vmatmul.mubr.bf16.gmra.mrb[0].mxu0 %v562
      %v764 = vpop.f32.mrb[0].mxu0
      %v765 = vadd.f32 0.0, %v764
      %v766 = vpop.f32.mrb[0].mxu0
      %v767 = vpop.f32.mrb[0].mxu0
      %v768 = vadd.f32 0.0, %v767
      %v769 = vpop.f32.mrb[0].mxu0
      %770 = vmatprep.mubr.bf16.mxu0 0
      %771 = vmatmul.mubr.bf16.gmra.mrb[0].mxu0 %v563
      %v772 = vpop.f32.mrb[0].mxu0
      %v773 = vadd.f32 0.0, %v772
      %v774 = vpop.f32.mrb[0].mxu0
      %v775 = vpop.f32.mrb[0].mxu0
      %v776 = vadd.f32 0.0, %v775
      %v777 = vpop.f32.mrb[0].mxu0
      %778 = vmatprep.mubr.bf16.mxu0 0
      %779 = vmatmul.mubr.bf16.gmra.mrb[0].mxu0 %v564
      %v780 = vpop.f32.mrb[0].mxu0
      %v781 = vadd.f32 0.0, %v780
      %v782 = vpop.f32.mrb[0].mxu0
      %v783 = vpop.f32.mrb[0].mxu0
      %v784 = vadd.f32 0.0, %v783
      %v785 = vpop.f32.mrb[0].mxu0
      %786 = vmatprep.mubr.bf16.mxu0 0
      %787 = vmatmul.mubr.bf16.gmra.mrb[0].mxu0 %v565
      %v788 = vpop.f32.mrb[0].mxu0
      %v789 = vadd.f32 0.0, %v788
      %v790 = vpop.f32.mrb[0].mxu0
      %v791 = vpop.f32.mrb[0].mxu0
      %v792 = vadd.f32 0.0, %v791
      %v793 = vpop.f32.mrb[0].mxu0
      %794 = vmatprep.mubr.bf16.mxu0 0
      %795 = vmatmul.mubr.bf16.gmra.mrb[0].mxu0 %v566
      %v796 = vpop.f32.mrb[0].mxu0
      %v797 = vadd.f32 0.0, %v796
      %v798 = vpop.f32.mrb[0].mxu0
      %v799 = vpop.f32.mrb[0].mxu0
      %v800 = vadd.f32 0.0, %v799
      %v801 = vpop.f32.mrb[0].mxu0
      %802 = vmatprep.mubr.bf16.mxu0 0
      %803 = vmatmul.mubr.bf16.gmra.mrb[0].mxu0 %v567
      %v804 = vpop.f32.mrb[0].mxu0
      %v805 = vadd.f32 0.0, %v804
      %v806 = vpop.f32.mrb[0].mxu0
      %v807 = vpop.f32.mrb[0].mxu0
      %v808 = vadd.f32 0.0, %v807
      %v809 = vpop.f32.mrb[0].mxu0
      %810 = vmatprep.mubr.bf16.mxu0 0
      %811 = vmatmul.mubr.bf16.gmra.mrb[0].mxu0 %v568
      %v812 = vpop.f32.mrb[0].mxu0
      %v813 = vadd.f32 0.0, %v812
      %v814 = vpop.f32.mrb[0].mxu0
      %v815 = vpop.f32.mrb[0].mxu0
      %v816 = vadd.f32 0.0, %v815
      %v817 = vpop.f32.mrb[0].mxu0
      %818 = vmatprep.mubr.bf16.mxu0 0
      %819 = vmatmul.mubr.bf16.gmra.mrb[0].mxu0 %v569
      %v820 = vpop.f32.mrb[0].mxu0
      %v821 = vadd.f32 0.0, %v820
      %v822 = vpop.f32.mrb[0].mxu0
      %v823 = vpop.f32.mrb[0].mxu0
      %v824 = vadd.f32 0.0, %v823
      %v825 = vpop.f32.mrb[0].mxu0
      %826 = vmatprep.mubr.bf16.mxu0 0
      %827 = vmatmul.mubr.bf16.gmra.mrb[0].mxu0 %v570
      %v828 = vpop.f32.mrb[0].mxu0
      %v829 = vadd.f32 0.0, %v828
      %v830 = vpop.f32.mrb[0].mxu0
      %v831 = vpop.f32.mrb[0].mxu0
      %v832 = vadd.f32 0.0, %v831
      %v833 = vpop.f32.mrb[0].mxu0
      %834 = vmatprep.mubr.bf16.mxu0 0
      %835 = vmatmul.mubr.bf16.gmra.mrb[0].mxu0 %v571
      %v836 = vpop.f32.mrb[0].mxu0
      %v837 = vadd.f32 0.0, %v836
      %v838 = vpop.f32.mrb[0].mxu0
      %v839 = vpop.f32.mrb[0].mxu0
      %v840 = vadd.f32 0.0, %v839
      %v841 = vpop.f32.mrb[0].mxu0
      %842 = vmatprep.mubr.bf16.mxu0 0
      %843 = vmatmul.mubr.bf16.gmra.mrb[0].mxu0 %v572
      %v844 = vpop.f32.mrb[0].mxu0
      %v845 = vadd.f32 0.0, %v844
      %v846 = vpop.f32.mrb[0].mxu0
      %v847 = vpop.f32.mrb[0].mxu0
      %v848 = vadd.f32 0.0, %v847
      %v849 = vpop.f32.mrb[0].mxu0
      %850 = vmatprep.mubr.bf16.mxu0 0
      %851 = vmatmul.mubr.bf16.gmra.mrb[0].mxu0 %v573
      %v852 = vpop.f32.mrb[0].mxu0
      %v853 = vadd.f32 0.0, %v852
      %v854 = vpop.f32.mrb[0].mxu0
      %v855 = vpop.f32.mrb[0].mxu0
      %v856 = vadd.f32 0.0, %v855
      %v857 = vpop.f32.mrb[0].mxu0
      %858 = vmatprep.mubr.bf16.mxu0 0
      %859 = vmatmul.mubr.bf16.gmra.mrb[0].mxu0 %v574
      %v860 = vpop.f32.mrb[0].mxu0
      %v861 = vadd.f32 0.0, %v860
      %v862 = vpop.f32.mrb[0].mxu0
      %v863 = vpop.f32.mrb[0].mxu0
      %v864 = vadd.f32 0.0, %v863
      %v865 = vpop.f32.mrb[0].mxu0
      %866 = vmatprep.mubr.bf16.mxu0 0
      %867 = vmatmul.mubr.bf16.gmra.mrb[0].mxu0 %v575
      %v868 = vpop.f32.mrb[0].mxu0
      %v869 = vadd.f32 0.0, %v868
      %v870 = vpop.f32.mrb[0].mxu0
      %v871 = vpop.f32.mrb[0].mxu0
      %v872 = vadd.f32 0.0, %v871
      %v873 = vpop.f32.mrb[0].mxu0
      %874 = vmatprep.mubr.bf16.mxu0 0
      %875 = vmatmul.mubr.bf16.gmra.mrb[0].mxu0 %v576
      %v876 = vpop.f32.mrb[0].mxu0
      %v877 = vadd.f32 0.0, %v876
      %v878 = vpop.f32.mrb[0].mxu0
      %v879 = vpop.f32.mrb[0].mxu0
      %v880 = vadd.f32 0.0, %v879
      %v881 = vpop.f32.mrb[0].mxu0
      %882 = vmatprep.mubr.bf16.mxu0 0
      %883 = vmatmul.mubr.bf16.gmra.mrb[0].mxu0 %v577
      %v884 = vpop.f32.mrb[0].mxu0
      %v885 = vadd.f32 0.0, %v884
      %v886 = vpop.f32.mrb[0].mxu0
      %v887 = vpop.f32.mrb[0].mxu0
      %v888 = vadd.f32 0.0, %v887
      %v889 = vpop.f32.mrb[0].mxu0
      %890 = vmatprep.mubr.bf16.mxu0 0
      %891 = vmatmul.mubr.bf16.gmra.mrb[0].mxu0 %v578
      %v892 = vpop.f32.mrb[0].mxu0
      %v893 = vadd.f32 0.0, %v892
      %v894 = vpop.f32.mrb[0].mxu0
      %v895 = vpop.f32.mrb[0].mxu0
      %v896 = vadd.f32 0.0, %v895
      %v897 = vpop.f32.mrb[0].mxu0
      %898 = vmatprep.mubr.bf16.mxu0 0
      %899 = vmatmul.mubr.bf16.gmra.mrb[0].mxu0 %v579
      %v900 = vpop.f32.mrb[0].mxu0
      %v901 = vadd.f32 0.0, %v900
      %v902 = vpop.f32.mrb[0].mxu0
      %v903 = vpop.f32.mrb[0].mxu0
      %v904 = vadd.f32 0.0, %v903
      %v905 = vpop.f32.mrb[0].mxu0
      %906 = vmatprep.mubr.bf16.mxu0 0
      %907 = vmatmul.mubr.bf16.gmra.mrb[0].mxu0 %v580
      %v908 = vpop.f32.mrb[0].mxu0
      %v909 = vadd.f32 0.0, %v908
      %v910 = vpop.f32.mrb[0].mxu0
      %v911 = vpop.f32.mrb[0].mxu0
      %v912 = vadd.f32 0.0, %v911
      %v913 = vpop.f32.mrb[0].mxu0
      %914 = vmatprep.mubr.bf16.mxu0 0
      %915 = vmatmul.mubr.bf16.gmra.mrb[0].mxu0 %v581
      %v916 = vpop.f32.mrb[0].mxu0
      %v917 = vadd.f32 0.0, %v916
      %v918 = vpop.f32.mrb[0].mxu0
      %v919 = vpop.f32.mrb[0].mxu0
      %v920 = vadd.f32 0.0, %v919
      %v921 = vpop.f32.mrb[0].mxu0
      %922 = vmatprep.mubr.bf16.mxu0 0
      %923 = vmatmul.mubr.bf16.gmra.mrb[0].mxu0 %v582
      %v924 = vpop.f32.mrb[0].mxu0
      %v925 = vadd.f32 0.0, %v924
      %v926 = vpop.f32.mrb[0].mxu0
      %v927 = vpop.f32.mrb[0].mxu0
      %v928 = vadd.f32 0.0, %v927
      %v929 = vpop.f32.mrb[0].mxu0
      %930 = vmatprep.mubr.bf16.mxu0 0
      %931 = vmatmul.mubr.bf16.gmra.mrb[0].mxu0 %v583
      %v932 = vpop.f32.mrb[0].mxu0
      %v933 = vadd.f32 0.0, %v932
      %v934 = vpop.f32.mrb[0].mxu0
      %v935 = vpop.f32.mrb[0].mxu0
      %v936 = vadd.f32 0.0, %v935
      %v937 = vpop.f32.mrb[0].mxu0
      %938 = vmatprep.mubr.bf16.mxu0 0
      %939 = vmatmul.mubr.bf16.gmra.mrb[0].mxu0 %v584
      %v940 = vpop.f32.mrb[0].mxu0
      %v941 = vadd.f32 0.0, %v940
      %v942 = vpop.f32.mrb[0].mxu0
      %v943 = vpop.f32.mrb[0].mxu0
      %v944 = vadd.f32 0.0, %v943
      %v945 = vpop.f32.mrb[0].mxu0
      %946 = vmatprep.mubr.bf16.mxu0 0
      %947 = vmatmul.mubr.bf16.gmra.mrb[0].mxu0 %v585
      %v948 = vpop.f32.mrb[0].mxu0
      %v949 = vadd.f32 0.0, %v948
      %v950 = vpop.f32.mrb[0].mxu0
      %v951 = vpop.f32.mrb[0].mxu0
      %v952 = vadd.f32 0.0, %v951
      %v953 = vpop.f32.mrb[0].mxu0
      %954 = vdwg.mxu0
      %v955 = vadd.f32 %v701, %v704
      %v956 = vadd.f32 %v955, %v709
      %v957 = vadd.f32 %v956, %v712
      %v958 = vadd.f32 %v957, %v717
      %v959 = vadd.f32 %v958, %v720
      %v960 = vadd.f32 %v959, %v725
      %v961 = vadd.f32 %v960, %v728
      %v962 = vadd.f32 %v961, %v733
      %v963 = vadd.f32 %v962, %v736
      %v964 = vadd.f32 %v963, %v741
      %v965 = vadd.f32 %v964, %v744
      %v966 = vadd.f32 %v965, %v749
      %v967 = vadd.f32 %v966, %v752
      %v968 = vadd.f32 %v967, %v757
      %v969 = vadd.f32 %v968, %v760
      %v970 = vadd.f32 %v969, %v765
      %v971 = vadd.f32 %v970, %v768
      %v972 = vadd.f32 %v971, %v773
      %v973 = vadd.f32 %v972, %v776
      %v974 = vadd.f32 %v973, %v781
      %v975 = vadd.f32 %v974, %v784
      %v976 = vadd.f32 %v975, %v789
      %v977 = vadd.f32 %v976, %v792
      %v978 = vadd.f32 %v977, %v797
      %v979 = vadd.f32 %v978, %v800
      %v980 = vadd.f32 %v979, %v805
      %v981 = vadd.f32 %v980, %v808
      %v982 = vadd.f32 %v981, %v813
      %v983 = vadd.f32 %v982, %v816
      %v984 = vadd.f32 %v983, %v821
      %v985 = vadd.f32 %v984, %v824
      %v986 = vadd.f32 %v985, %v829
      %v987 = vadd.f32 %v986, %v832
      %v988 = vadd.f32 %v987, %v837
      %v989 = vadd.f32 %v988, %v840
      %v990 = vadd.f32 %v989, %v845
      %v991 = vadd.f32 %v990, %v848
      %v992 = vadd.f32 %v991, %v853
      %v993 = vadd.f32 %v992, %v856
      %v994 = vadd.f32 %v993, %v861
      %v995 = vadd.f32 %v994, %v864
      %v996 = vadd.f32 %v995, %v869
      %v997 = vadd.f32 %v996, %v872
      %v998 = vadd.f32 %v997, %v877
      %v999 = vadd.f32 %v998, %v880
      %v1000 = vadd.f32 %v999, %v885
      %v1001 = vadd.f32 %v1000, %v888
      %v1002 = vadd.f32 %v1001, %v893
      %v1003 = vadd.f32 %v1002, %v896
      %v1004 = vadd.f32 %v1003, %v901
      %v1005 = vadd.f32 %v1004, %v904
      %v1006 = vadd.f32 %v1005, %v909
      %v1007 = vadd.f32 %v1006, %v912
      %v1008 = vadd.f32 %v1007, %v917
      %v1009 = vadd.f32 %v1008, %v920
      %v1010 = vadd.f32 %v1009, %v925
      %v1011 = vadd.f32 %v1010, %v928
      %v1012 = vadd.f32 %v1011, %v933
      %v1013 = vadd.f32 %v1012, %v936
      %v1014 = vadd.f32 %v1013, %v941
      %v1015 = vadd.f32 %v1014, %v944
      %v1016 = vadd.f32 %v1015, %v949
      %v1017 = vadd.f32 %v1016, %v952
      %v1018 = vrot.slane %v1017, 4
      %v1019 = vadd.f32 %v1017, %v1018
      %v1020 = vrot.slane %v1019, 2
      %v1021 = vadd.f32 %v1019, %v1020
      %v1022 = vrot.slane %v1021, 1
      %v1023 = vadd.f32 %v1021, %v1022
      %1024 = vst [vmem:[%s333] sm:$0xff] %v1023
      %v1025 = vmul.f32 %v701, %v701
      %v1026 = vmul.f32 %v704, %v704
      %v1027 = vmul.f32 %v709, %v709
      %v1028 = vmul.f32 %v712, %v712
      %v1029 = vmul.f32 %v717, %v717
      %v1030 = vmul.f32 %v720, %v720
      %v1031 = vmul.f32 %v725, %v725
      %v1032 = vmul.f32 %v728, %v728
      %v1033 = vmul.f32 %v733, %v733
      %v1034 = vmul.f32 %v736, %v736
      %v1035 = vmul.f32 %v741, %v741
      %v1036 = vmul.f32 %v744, %v744
      %v1037 = vmul.f32 %v749, %v749
      %v1038 = vmul.f32 %v752, %v752
      %v1039 = vmul.f32 %v757, %v757
      %v1040 = vmul.f32 %v760, %v760
      %v1041 = vmul.f32 %v765, %v765
      %v1042 = vmul.f32 %v768, %v768
      %v1043 = vmul.f32 %v773, %v773
      %v1044 = vmul.f32 %v776, %v776
      %v1045 = vmul.f32 %v781, %v781
      %v1046 = vmul.f32 %v784, %v784
      %v1047 = vmul.f32 %v789, %v789
      %v1048 = vmul.f32 %v792, %v792
      %v1049 = vmul.f32 %v797, %v797
      %v1050 = vmul.f32 %v800, %v800
      %v1051 = vmul.f32 %v805, %v805
      %v1052 = vmul.f32 %v808, %v808
      %v1053 = vmul.f32 %v813, %v813
      %v1054 = vmul.f32 %v816, %v816
      %v1055 = vmul.f32 %v821, %v821
      %v1056 = vmul.f32 %v824, %v824
      %v1057 = vmul.f32 %v829, %v829
      %v1058 = vmul.f32 %v832, %v832
      %v1059 = vmul.f32 %v837, %v837
      %v1060 = vmul.f32 %v840, %v840
      %v1061 = vmul.f32 %v845, %v845
      %v1062 = vmul.f32 %v848, %v848
      %v1063 = vmul.f32 %v853, %v853
      %v1064 = vmul.f32 %v856, %v856
      %v1065 = vmul.f32 %v861, %v861
      %v1066 = vmul.f32 %v864, %v864
      %v1067 = vmul.f32 %v869, %v869
      %v1068 = vmul.f32 %v872, %v872
      %v1069 = vmul.f32 %v877, %v877
      %v1070 = vmul.f32 %v880, %v880
      %v1071 = vmul.f32 %v885, %v885
      %v1072 = vmul.f32 %v888, %v888
      %v1073 = vmul.f32 %v893, %v893
      %v1074 = vmul.f32 %v896, %v896
      %v1075 = vmul.f32 %v901, %v901
      %v1076 = vmul.f32 %v904, %v904
      %v1077 = vmul.f32 %v909, %v909
      %v1078 = vmul.f32 %v912, %v912
      %v1079 = vmul.f32 %v917, %v917
      %v1080 = vmul.f32 %v920, %v920
      %v1081 = vmul.f32 %v925, %v925
      %v1082 = vmul.f32 %v928, %v928
      %v1083 = vmul.f32 %v933, %v933
      %v1084 = vmul.f32 %v936, %v936
      %v1085 = vmul.f32 %v941, %v941
      %v1086 = vmul.f32 %v944, %v944
      %v1087 = vmul.f32 %v949, %v949
      %v1088 = vmul.f32 %v952, %v952
      %v1089 = vadd.f32 %v1025, %v1026
      %v1090 = vadd.f32 %v1089, %v1027
      %v1091 = vadd.f32 %v1090, %v1028
      %v1092 = vadd.f32 %v1091, %v1029
      %v1093 = vadd.f32 %v1092, %v1030
      %v1094 = vadd.f32 %v1093, %v1031
      %v1095 = vadd.f32 %v1094, %v1032
      %v1096 = vadd.f32 %v1095, %v1033
      %v1097 = vadd.f32 %v1096, %v1034
      %v1098 = vadd.f32 %v1097, %v1035
      %v1099 = vadd.f32 %v1098, %v1036
      %v1100 = vadd.f32 %v1099, %v1037
      %v1101 = vadd.f32 %v1100, %v1038
      %v1102 = vadd.f32 %v1101, %v1039
      %v1103 = vadd.f32 %v1102, %v1040
      %v1104 = vadd.f32 %v1103, %v1041
      %v1105 = vadd.f32 %v1104, %v1042
      %v1106 = vadd.f32 %v1105, %v1043
      %v1107 = vadd.f32 %v1106, %v1044
      %v1108 = vadd.f32 %v1107, %v1045
      %v1109 = vadd.f32 %v1108, %v1046
      %v1110 = vadd.f32 %v1109, %v1047
      %v1111 = vadd.f32 %v1110, %v1048
      %v1112 = vadd.f32 %v1111, %v1049
      %v1113 = vadd.f32 %v1112, %v1050
      %v1114 = vadd.f32 %v1113, %v1051
      %v1115 = vadd.f32 %v1114, %v1052
      %v1116 = vadd.f32 %v1115, %v1053
      %v1117 = vadd.f32 %v1116, %v1054
      %v1118 = vadd.f32 %v1117, %v1055
      %v1119 = vadd.f32 %v1118, %v1056
      %v1120 = vadd.f32 %v1119, %v1057
      %v1121 = vadd.f32 %v1120, %v1058
      %v1122 = vadd.f32 %v1121, %v1059
      %v1123 = vadd.f32 %v1122, %v1060
      %v1124 = vadd.f32 %v1123, %v1061
      %v1125 = vadd.f32 %v1124, %v1062
      %v1126 = vadd.f32 %v1125, %v1063
      %v1127 = vadd.f32 %v1126, %v1064
      %v1128 = vadd.f32 %v1127, %v1065
      %v1129 = vadd.f32 %v1128, %v1066
      %v1130 = vadd.f32 %v1129, %v1067
      %v1131 = vadd.f32 %v1130, %v1068
      %v1132 = vadd.f32 %v1131, %v1069
      %v1133 = vadd.f32 %v1132, %v1070
      %v1134 = vadd.f32 %v1133, %v1071
      %v1135 = vadd.f32 %v1134, %v1072
      %v1136 = vadd.f32 %v1135, %v1073
      %v1137 = vadd.f32 %v1136, %v1074
      %v1138 = vadd.f32 %v1137, %v1075
      %v1139 = vadd.f32 %v1138, %v1076
      %v1140 = vadd.f32 %v1139, %v1077
      %v1141 = vadd.f32 %v1140, %v1078
      %v1142 = vadd.f32 %v1141, %v1079
      %v1143 = vadd.f32 %v1142, %v1080
      %v1144 = vadd.f32 %v1143, %v1081
      %v1145 = vadd.f32 %v1144, %v1082
      %v1146 = vadd.f32 %v1145, %v1083
      %v1147 = vadd.f32 %v1146, %v1084
      %v1148 = vadd.f32 %v1147, %v1085
      %v1149 = vadd.f32 %v1148, %v1086
      %v1150 = vadd.f32 %v1149, %v1087
      %v1151 = vadd.f32 %v1150, %v1088
      %v1152 = vrot.slane %v1151, 4
      %v1153 = vadd.f32 %v1151, %v1152
      %v1154 = vrot.slane %v1153, 2
      %v1155 = vadd.f32 %v1153, %v1154
      %v1156 = vrot.slane %v1155, 1
      %v1157 = vadd.f32 %v1155, %v1156
      %1158 = vst [vmem:[%s344] sm:$0xff] %v1157
      %1159 = vxpose.xlu0.b32.start [1/16] %v701, 128
      %1160 = vxpose.xlu0.b32.cont [2/16] %v704, 128
      %1161 = vxpose.xlu0.b32.cont [3/16] %v709, 128
      %1162 = vxpose.xlu0.b32.cont [4/16] %v712, 128
      %1163 = vxpose.xlu0.b32.cont [5/16] %v717, 128
      %1164 = vxpose.xlu0.b32.cont [6/16] %v720, 128
      %1165 = vxpose.xlu0.b32.cont [7/16] %v725, 128
      %1166 = vxpose.xlu0.b32.cont [8/16] %v728, 128
      %1167 = vxpose.xlu0.b32.cont [9/16] %v733, 128
      %1168 = vxpose.xlu0.b32.cont [10/16] %v736, 128
      %1169 = vxpose.xlu0.b32.cont [11/16] %v741, 128
      %1170 = vxpose.xlu0.b32.cont [12/16] %v744, 128
      %1171 = vxpose.xlu0.b32.cont [13/16] %v749, 128
      %1172 = vxpose.xlu0.b32.cont [14/16] %v752, 128
      %1173 = vxpose.xlu0.b32.cont [15/16] %v757, 128
      %1174 = vxpose.xlu0.b32.end [16/16] %v760, 128
      %v1175 = vpop.trf.xlu0
      %v1176 = vpop.trf.xlu0
      %v1177 = vpop.trf.xlu0
      %v1178 = vpop.trf.xlu0
      %v1179 = vpop.trf.xlu0
      %v1180 = vpop.trf.xlu0
      %v1181 = vpop.trf.xlu0
      %v1182 = vpop.trf.xlu0
      %v1183 = vpop.trf.xlu0
      %v1184 = vpop.trf.xlu0
      %v1185 = vpop.trf.xlu0
      %v1186 = vpop.trf.xlu0
      %v1187 = vpop.trf.xlu0
      %v1188 = vpop.trf.xlu0
      %v1189 = vpop.trf.xlu0
      %v1190 = vpop.trf.xlu0
      %1191 = vxpose.xlu0.b32.start [1/16] %v765, 128
      %1192 = vxpose.xlu0.b32.cont [2/16] %v768, 128
      %1193 = vxpose.xlu0.b32.cont [3/16] %v773, 128
      %1194 = vxpose.xlu0.b32.cont [4/16] %v776, 128
      %1195 = vxpose.xlu0.b32.cont [5/16] %v781, 128
      %1196 = vxpose.xlu0.b32.cont [6/16] %v784, 128
      %1197 = vxpose.xlu0.b32.cont [7/16] %v789, 128
      %1198 = vxpose.xlu0.b32.cont [8/16] %v792, 128
      %1199 = vxpose.xlu0.b32.cont [9/16] %v797, 128
      %1200 = vxpose.xlu0.b32.cont [10/16] %v800, 128
      %1201 = vxpose.xlu0.b32.cont [11/16] %v805, 128
      %1202 = vxpose.xlu0.b32.cont [12/16] %v808, 128
      %1203 = vxpose.xlu0.b32.cont [13/16] %v813, 128
      %1204 = vxpose.xlu0.b32.cont [14/16] %v816, 128
      %1205 = vxpose.xlu0.b32.cont [15/16] %v821, 128
      %1206 = vxpose.xlu0.b32.end [16/16] %v824, 128
      %v1207 = vpop.trf.xlu0
      %v1208 = vpop.trf.xlu0
      %v1209 = vpop.trf.xlu0
      %v1210 = vpop.trf.xlu0
      %v1211 = vpop.trf.xlu0
      %v1212 = vpop.trf.xlu0
      %v1213 = vpop.trf.xlu0
      %v1214 = vpop.trf.xlu0
      %v1215 = vpop.trf.xlu0
      %v1216 = vpop.trf.xlu0
      %v1217 = vpop.trf.xlu0
      %v1218 = vpop.trf.xlu0
      %v1219 = vpop.trf.xlu0
      %v1220 = vpop.trf.xlu0
      %v1221 = vpop.trf.xlu0
      %v1222 = vpop.trf.xlu0
      %1223 = vxpose.xlu0.b32.start [1/16] %v829, 128
      %1224 = vxpose.xlu0.b32.cont [2/16] %v832, 128
      %1225 = vxpose.xlu0.b32.cont [3/16] %v837, 128
      %1226 = vxpose.xlu0.b32.cont [4/16] %v840, 128
      %1227 = vxpose.xlu0.b32.cont [5/16] %v845, 128
      %1228 = vxpose.xlu0.b32.cont [6/16] %v848, 128
      %1229 = vxpose.xlu0.b32.cont [7/16] %v853, 128
      %1230 = vxpose.xlu0.b32.cont [8/16] %v856, 128
      %1231 = vxpose.xlu0.b32.cont [9/16] %v861, 128
      %1232 = vxpose.xlu0.b32.cont [10/16] %v864, 128
      %1233 = vxpose.xlu0.b32.cont [11/16] %v869, 128
      %1234 = vxpose.xlu0.b32.cont [12/16] %v872, 128
      %1235 = vxpose.xlu0.b32.cont [13/16] %v877, 128
      %1236 = vxpose.xlu0.b32.cont [14/16] %v880, 128
      %1237 = vxpose.xlu0.b32.cont [15/16] %v885, 128
      %1238 = vxpose.xlu0.b32.end [16/16] %v888, 128
      %v1239 = vpop.trf.xlu0
      %v1240 = vpop.trf.xlu0
      %v1241 = vpop.trf.xlu0
      %v1242 = vpop.trf.xlu0
      %v1243 = vpop.trf.xlu0
      %v1244 = vpop.trf.xlu0
      %v1245 = vpop.trf.xlu0
      %v1246 = vpop.trf.xlu0
      %v1247 = vpop.trf.xlu0
      %v1248 = vpop.trf.xlu0
      %v1249 = vpop.trf.xlu0
      %v1250 = vpop.trf.xlu0
      %v1251 = vpop.trf.xlu0
      %v1252 = vpop.trf.xlu0
      %v1253 = vpop.trf.xlu0
      %v1254 = vpop.trf.xlu0
      %1255 = vxpose.xlu0.b32.start [1/16] %v893, 128
      %1256 = vxpose.xlu0.b32.cont [2/16] %v896, 128
      %1257 = vxpose.xlu0.b32.cont [3/16] %v901, 128
      %1258 = vxpose.xlu0.b32.cont [4/16] %v904, 128
      %1259 = vxpose.xlu0.b32.cont [5/16] %v909, 128
      %1260 = vxpose.xlu0.b32.cont [6/16] %v912, 128
      %1261 = vxpose.xlu0.b32.cont [7/16] %v917, 128
      %1262 = vxpose.xlu0.b32.cont [8/16] %v920, 128
      %1263 = vxpose.xlu0.b32.cont [9/16] %v925, 128
      %1264 = vxpose.xlu0.b32.cont [10/16] %v928, 128
      %1265 = vxpose.xlu0.b32.cont [11/16] %v933, 128
      %1266 = vxpose.xlu0.b32.cont [12/16] %v936, 128
      %1267 = vxpose.xlu0.b32.cont [13/16] %v941, 128
      %1268 = vxpose.xlu0.b32.cont [14/16] %v944, 128
      %1269 = vxpose.xlu0.b32.cont [15/16] %v949, 128
      %1270 = vxpose.xlu0.b32.end [16/16] %v952, 128
      %v1271 = vpop.trf.xlu0
      %v1272 = vpop.trf.xlu0
      %v1273 = vpop.trf.xlu0
      %v1274 = vpop.trf.xlu0
      %v1275 = vpop.trf.xlu0
      %v1276 = vpop.trf.xlu0
      %v1277 = vpop.trf.xlu0
      %v1278 = vpop.trf.xlu0
      %v1279 = vpop.trf.xlu0
      %v1280 = vpop.trf.xlu0
      %v1281 = vpop.trf.xlu0
      %v1282 = vpop.trf.xlu0
      %v1283 = vpop.trf.xlu0
      %v1284 = vpop.trf.xlu0
      %v1285 = vpop.trf.xlu0
      %v1286 = vpop.trf.xlu0
      %v1287 = vpack.c.bf16 %v1175, %v1175
      %v1288 = vpack.c.bf16 %v1207, %v1207
      %v1289 = vpack.c.bf16 %v1239, %v1239
      %v1290 = vpack.c.bf16 %v1271, %v1271
      %v1295 = vunpack.c.l.b16 %v1287
      %v1296 = vunpack.c.l.b16 %v1288
      %v1297 = vunpack.c.l.b16 %v1289
      %v1298 = vunpack.c.l.b16 %v1290
      %v1299 = vpack.c.b16 %v1296, %v1295
      %v1300 = vpack.c.b16 %v1298, %v1297
      %1303 = vst [vmem:[%s321] sm:$0xff] %v1299
      %1304 = vst [vmem:[%s321 + $0x8] sm:$0xff] %v1300
      %s1305 = smul.u32 4, %s23
      %p1306 = scmp.lt.s32.totalorder %s21, 0
      %s1307 = scalar_select %p1306, %s21, 0
      %p1308 = scmp.lt.s32.totalorder %s22, 1
      %s1309 = scalar_select %p1308, %s22, 1
      %p1310 = scmp.lt.s32.totalorder %s1305, 3
      %s1311 = scalar_select %p1310, %s1305, 3
      %s1312 = smul.addr %s1309, 4
      %s1313 = sadd.s32 %s1311, %s1312
      %s1314 = smul.addr %s1307, 8
      %s1315 = sadd.s32 %s1313, %s1314
      %s1316 = smul.addr %s1315, 4
      %s1317 = scalar_lea.vmem %s2, %s1316
      %p1318 = scmp.lt.s32.totalorder %s21, 0
      %s1319 = scalar_select %p1318, %s21, 0
      %p1320 = scmp.lt.s32.totalorder %s22, 1
      %s1321 = scalar_select %p1320, %s22, 1
      %p1322 = scmp.lt.s32.totalorder %s23, 0
      %s1323 = scalar_select %p1322, %s23, 0
      %s1324 = sadd.s32 %s1323, %s1321
      %s1325 = smul.addr %s1319, 2
      %s1326 = sadd.s32 %s1324, %s1325
      %s1327 = smul.addr %s1326, 8
      %s1328 = scalar_lea.vmem %s3, %s1327
      %p1329 = scmp.lt.s32.totalorder %s21, 0
      %s1330 = scalar_select %p1329, %s21, 0
      %p1331 = scmp.lt.s32.totalorder %s22, 1
      %s1332 = scalar_select %p1331, %s22, 1
      %p1333 = scmp.lt.s32.totalorder %s23, 0
      %s1334 = scalar_select %p1333, %s23, 0
      %s1335 = sadd.s32 %s1334, %s1332
      %s1336 = smul.addr %s1330, 2
      %s1337 = sadd.s32 %s1335, %s1336
      %s1338 = smul.addr %s1337, 8
      %s1339 = scalar_lea.vmem %s4, %s1338
      // Predicated region
      $region29: #{x3d_basic_conv_forward.2} parent=27 // pred_check
        %p1340 = pneg %p113
      $region30: #{x3d_basic_conv_forward.2} parent=27 // pred_check_branch
        %1342 = sbr.rel (%p1340) target = $region32
      $region31: #{x3d_basic_conv_forward.2} parent=27 // pred_region
        %s1343 = smul.u32 4, %s23
      $region32: #{x3d_basic_conv_forward.2} parent=27 // pred_fallthru
        _
      // Predicated region
      $region33: #{x3d_basic_conv_forward.2} parent=27 // pred_check
        %p1344 = pneg %p143
      $region34: #{x3d_basic_conv_forward.2} parent=27 // pred_check_branch
        %1346 = sbr.rel (%p1344) target = $region36
      $region35: #{x3d_basic_conv_forward.2} parent=27 // pred_region
        _
      $region36: #{x3d_basic_conv_forward.2} parent=27 // pred_fallthru
        _
      // Predicated region
      $region37: #{x3d_basic_conv_forward.2} parent=27 // pred_check
        %p1347 = pneg %p173
      $region38: #{x3d_basic_conv_forward.2} parent=27 // pred_check_branch
        %1349 = sbr.rel (%p1347) target = $region40
      $region39: #{x3d_basic_conv_forward.2} parent=27 // pred_region
        _
      $region40: #{x3d_basic_conv_forward.2} parent=27 // pred_fallthru
        _
    $region28: #{x3d_basic_conv_forward.2} parent=5 // pred_fallthru
      _
    %p1350 = scmp.le.s32.totalorder 2, %s11
    // Predicated region
    $region41: #{x3d_basic_conv_forward.2} parent=5 // pred_check
      %p1351 = pneg %p1350
    $region42: #{x3d_basic_conv_forward.2} parent=5 // pred_check_branch
      %1353 = sbr.rel (%p1351) target = $region44
    $region43: #{x3d_basic_conv_forward.2} parent=5 // pred_region
      %s1354 = ssub.s32 %s11, 2
      // Predicated region
      $region45: #{x3d_basic_conv_forward.2} parent=43 // pred_check
        %p1355 = pneg %p119
      $region46: #{x3d_basic_conv_forward.2} parent=43 // pred_check_branch
        %1357 = sbr.rel (%p1355) target = $region48
      $region47: #{x3d_basic_conv_forward.2} parent=43 // pred_region
        %s1358 = smul.u32 4, %s26
        %p1359 = scmp.lt.s32.totalorder %s24, 0
        %s1360 = scalar_select %p1359, %s24, 0
        %p1361 = scmp.lt.s32.totalorder %s25, 1
        %s1362 = scalar_select %p1361, %s25, 1
        %p1363 = scmp.lt.s32.totalorder %s1358, 3
        %s1364 = scalar_select %p1363, %s1358, 3
        %s1365 = smul.addr %s1362, 4
        %s1366 = sadd.s32 %s1364, %s1365
        %s1367 = smul.addr %s1360, 8
        %s1368 = sadd.s32 %s1366, %s1367
        %s1369 = smul.addr %s1368, 4
        %s1370 = scalar_lea.vmem %s2, %s1369
      $region48: #{x3d_basic_conv_forward.2} parent=43 // pred_fallthru
        _
      // Predicated region
      $region49: #{x3d_basic_conv_forward.2} parent=43 // pred_check
        %p1371 = pneg %p149
      $region50: #{x3d_basic_conv_forward.2} parent=43 // pred_check_branch
        %1373 = sbr.rel (%p1371) target = $region52
      $region51: #{x3d_basic_conv_forward.2} parent=43 // pred_region
        %p1374 = scmp.lt.s32.totalorder %s24, 0
        %s1375 = scalar_select %p1374, %s24, 0
        %p1376 = scmp.lt.s32.totalorder %s25, 1
        %s1377 = scalar_select %p1376, %s25, 1
        %p1378 = scmp.lt.s32.totalorder %s26, 0
        %s1379 = scalar_select %p1378, %s26, 0
        %s1380 = sadd.s32 %s1379, %s1377
        %s1381 = smul.addr %s1375, 2
        %s1382 = sadd.s32 %s1380, %s1381
        %s1383 = smul.addr %s1382, 8
        %s1384 = scalar_lea.vmem %s3, %s1383
      $region52: #{x3d_basic_conv_forward.2} parent=43 // pred_fallthru
        _
      // Predicated region
      $region53: #{x3d_basic_conv_forward.2} parent=43 // pred_check
        %p1385 = pneg %p179
      $region54: #{x3d_basic_conv_forward.2} parent=43 // pred_check_branch
        %1387 = sbr.rel (%p1385) target = $region56
      $region55: #{x3d_basic_conv_forward.2} parent=43 // pred_region
        %p1388 = scmp.lt.s32.totalorder %s24, 0
        %s1389 = scalar_select %p1388, %s24, 0
        %p1390 = scmp.lt.s32.totalorder %s25, 1
        %s1391 = scalar_select %p1390, %s25, 1
        %p1392 = scmp.lt.s32.totalorder %s26, 0
        %s1393 = scalar_select %p1392, %s26, 0
        %s1394 = sadd.s32 %s1393, %s1391
        %s1395 = smul.addr %s1389, 2
        %s1396 = sadd.s32 %s1394, %s1395
        %s1397 = smul.addr %s1396, 8
        %s1398 = scalar_lea.vmem %s4, %s1397
      $region56: #{x3d_basic_conv_forward.2} parent=43 // pred_fallthru
        _
    $region44: #{x3d_basic_conv_forward.2} parent=5 // pred_fallthru
      _
  $region6: #{x3d_basic_conv_forward.2} parent=0 // loop_footer
    %s15 = sadd.s32 1, %s11
  $region7: #{x3d_basic_conv_forward.2} parent=0 // loop_footer_branch
    %10 = sbr.rel target = $region3
  $region8: #{x3d_basic_conv_forward.2} parent=0 // loop_exit
    _

</llo_original>
